<compile_context>
chip_gen: v6e
topology: v6e:2x2x1
jax: 0.10.0
libtpu: 0.0.40
codegen_flags: <defaults>
</compile_context>

<pallas_src>
import jax
import jax.numpy as jnp
from jax.experimental import pallas as pl
from jax.experimental.pallas import tpu as pltpu

# Module hyper-parameters (from the PyTorch reference)
NIN = 28 * 28          # 784
NH1 = 28 * 28 * 5      # 3920
NH2 = 40


def _round_up(x, m):
    return (x + m - 1) // m * m


def _disc_kernel(x_ref, w1_ref, b1_ref, w2_ref, b2_ref, w3_ref, b3_ref,
                 o_ref, h2_acc):
    """One (batch tile, NH1 tile) step of the fused MLP."""
    k = pl.program_id(1)

    @pl.when(k == 0)
    def _():
        h2_acc[...] = jnp.zeros_like(h2_acc)

    # Layer 1 column tile: relu(x @ W1[:, tile] + b1[tile])  (bf16 MXU, f32 acc)
    h1 = jnp.dot(x_ref[...], w1_ref[...], preferred_element_type=jnp.float32)
    h1 = jnp.maximum(h1 + b1_ref[...], 0.0)

    # Layer 2 partial reduction over the same NH1 tile (bf16 MXU, f32 acc)
    h2_acc[...] += jnp.dot(h1.astype(jnp.bfloat16), w2_ref[...],
                           preferred_element_type=jnp.float32)

    @pl.when(k == pl.num_programs(1) - 1)
    def _():
        h2 = jnp.maximum(h2_acc[...] + b2_ref[...], 0.0)            # (TB, NH2)
        # Layer 3 (NH2 -> 1) on the VPU/XLU: broadcast-mul + lane reduce.
        logits = jnp.sum(h2 * w3_ref[...], axis=-1, keepdims=True) + b3_ref[...]
        o_ref[...] = (1.0 / (1.0 + jnp.exp(-logits))).astype(o_ref.dtype)


def discriminator_forward(x, prepared, *, tb=256, tk=512):
    """x: any shape flattening to NIN per row (NCHW ok). Returns (B, 1) f32."""
    w1p, b1p, w2p, b2, w3row, b3 = prepared
    nh1p = w1p.shape[1]
    assert nh1p % tk == 0

    xf = x.reshape(-1, NIN)                                   # == view(-1, nin)
    B = xf.shape[0]
    tb = min(tb, _round_up(B, 8))                             # sublane-aligned tile
    bp = _round_up(B, tb)
    if bp != B:
        xf = jnp.pad(xf, ((0, bp - B), (0, 0)))
    xf = xf.astype(jnp.bfloat16)

    grid = (bp // tb, nh1p // tk)                             # reduction axis last
    out = pl.pallas_call(
        _disc_kernel,
        out_shape=jax.ShapeDtypeStruct((bp, 1), jnp.float32),
        grid=grid,
        in_specs=[
            pl.BlockSpec((tb, NIN), lambda i, k: (i, 0)),     # x batch tile
            pl.BlockSpec((NIN, tk), lambda i, k: (0, k)),     # W1 column tile (bf16)
            pl.BlockSpec((1, tk),   lambda i, k: (0, k)),     # b1 tile
            pl.BlockSpec((tk, NH2), lambda i, k: (k, 0)),     # W2 row tile (bf16)
            pl.BlockSpec((1, NH2),  lambda i, k: (0, 0)),     # b2 (resident)
            pl.BlockSpec((1, NH2),  lambda i, k: (0, 0)),     # w3 row (resident)
            pl.BlockSpec((1, 1),    lambda i, k: (0, 0)),     # b3
        ],
        out_specs=pl.BlockSpec((tb, 1), lambda i, k: (i, 0)),
        scratch_shapes=[pltpu.VMEM((tb, NH2), jnp.float32)],  # h2 accumulator
        compiler_params=pltpu.CompilerParams(
            dimension_semantics=("parallel", "arbitrary")),
    )(xf, w1p, b1p, w2p, b2, w3row, b3)
    return out[:B]


def init_params(key):
    """Deterministic init matching nn.Linear's U(-1/sqrt(fan_in), 1/sqrt(fan_in)).
    Weights stored as (in, out) = transpose of torch's (out, in)."""
    def linear(key, fan_in, fan_out):
        kw, kb = jax.random.split(key)
        bound = 1.0 / jnp.sqrt(float(fan_in))
        w = jax.random.uniform(kw, (fan_in, fan_out), jnp.float32, -bound, bound)
        b = jax.random.uniform(kb, (1, fan_out), jnp.float32, -bound, bound)
        return w, b

    k1, k2, k3 = jax.random.split(key, 3)
    w1, b1 = linear(k1, NIN, NH1)
    w2, b2 = linear(k2, NH1, NH2)
    w3, b3 = linear(k3, NH2, 1)
    return (w1, b1, w2, b2, w3, b3)


def prepare_params(params, *, tk=512):
    """One-time layout prep: pad NH1 to a multiple of tk (zeros -> exact),
    cast matmul weights to bf16, reshape w3/b3 to broadcastable rows."""
    w1, b1, w2, b2, w3, b3 = params
    nh1p = _round_up(NH1, tk)
    pad = nh1p - NH1
    w1p = jnp.pad(w1, ((0, 0), (0, pad))).astype(jnp.bfloat16)   # (NIN, nh1p)
    b1p = jnp.pad(b1, ((0, 0), (0, pad)))                        # (1, nh1p) f32
    w2p = jnp.pad(w2, ((0, pad), (0, 0))).astype(jnp.bfloat16)   # (nh1p, NH2)
    w3row = w3.reshape(1, NH2)                                   # (1, NH2) f32
    b3m = b3.reshape(1, 1)                                       # (1, 1) f32
    return (w1p, b1p, w2p, b2, w3row, b3m)


def reference_forward(x, params):
    """Pure-JAX f32 reference (mirrors the PyTorch module)."""
    w1, b1, w2, b2, w3, b3 = params
    xf = x.reshape(-1, NIN)
    h1 = jnp.maximum(xf @ w1 + b1, 0.0)
    h2 = jnp.maximum(h1 @ w2 + b2, 0.0)
    return jax.nn.sigmoid(h2 @ w3 + b3.reshape(1, 1))


if __name__ == "__main__":
    key = jax.random.PRNGKey(0)
    k_params, k_x = jax.random.split(key)

    params = init_params(k_params)
    prepared = prepare_params(params)

    # Small MNIST-like batch: NCHW (2, 1, 28, 28) -> view(-1, 784) inside forward
    x = jax.random.normal(k_x, (2, 1, 28, 28), dtype=jnp.float32)

    out = discriminator_forward(x, prepared)
    out = jax.block_until_ready(out)

    assert out.shape == (2, 1)
    assert bool(jnp.all((out >= 0.0) & (out <= 1.0)))

    ref = reference_forward(x, params)
    assert bool(jnp.allclose(out, ref, atol=5e-2)), (out, ref)

    print("KERNEL_OK")
</pallas_src>

<mosaic_0001>
module attributes {stable_mosaic.version = 11 : i64} {
  func.func @_disc_kernel(%arg0: i32, %arg1: i32, %arg2: memref<8x784xbf16, #tpu.memory_space<vmem>>, %arg3: memref<784x512xbf16, #tpu.memory_space<vmem>>, %arg4: memref<1x512xf32, #tpu.memory_space<vmem>>, %arg5: memref<512x40xbf16, #tpu.memory_space<vmem>>, %arg6: memref<1x40xf32, #tpu.memory_space<vmem>>, %arg7: memref<1x40xf32, #tpu.memory_space<vmem>>, %arg8: memref<1x1xf32, #tpu.memory_space<vmem>>, %arg9: memref<8x1xf32, #tpu.memory_space<vmem>>, %arg10: memref<8x40xf32, #tpu.memory_space<vmem>>) attributes {dimension_semantics = [#tpu.dimension_semantics<parallel>, #tpu.dimension_semantics<arbitrary>], iteration_bounds = array<i64: 1, 8>, scalar_prefetch = 0 : i64, scratch_operands = 1 : i64, tpu.core_type = #tpu.core_type<tc>, window_params = [{transform_indices = @transform_0, window_bounds = array<i64: 8, 784>}, {transform_indices = @transform_1, window_bounds = array<i64: 784, 512>}, {transform_indices = @transform_2, window_bounds = array<i64: 1, 512>}, {transform_indices = @transform_3, window_bounds = array<i64: 512, 40>}, {pipeline_mode = #tpu.pipeline_mode<synchronous>, transform_indices = @transform_4, window_bounds = array<i64: 1, 40>}, {pipeline_mode = #tpu.pipeline_mode<synchronous>, transform_indices = @transform_5, window_bounds = array<i64: 1, 40>}, {pipeline_mode = #tpu.pipeline_mode<synchronous>, transform_indices = @transform_6, window_bounds = array<i64: 1, 1>}, {transform_indices = @transform_7, window_bounds = array<i64: 8, 1>}]} {
    %c0_i32 = arith.constant 0 : i32
    %0 = arith.cmpi eq, %arg1, %c0_i32 : i32
    %1 = arith.extui %0 : i1 to i32
    %c0_i32_0 = arith.constant 0 : i32
    %2 = arith.cmpi ne, %1, %c0_i32_0 : i32
    scf.if %2 {
      %cst_15 = arith.constant 0.000000e+00 : f32
      %20 = vector.broadcast %cst_15 : f32 to vector<8x40xf32>
      %c0_16 = arith.constant 0 : index
      %c0_17 = arith.constant 0 : index
      %21 = vector.load %arg10[%c0_16, %c0_17] : memref<8x40xf32, #tpu.memory_space<vmem>>, vector<8x40xf32>
      tpu.vector_store %arg10[%c0_16, %c0_17], %20 {strides = array<i32>} : memref<8x40xf32, #tpu.memory_space<vmem>>, vector<8x40xf32>,
    } else {
    }
    %c0 = arith.constant 0 : index
    %c0_1 = arith.constant 0 : index
    %3 = vector.load %arg2[%c0, %c0_1] : memref<8x784xbf16, #tpu.memory_space<vmem>>, vector<8x784xbf16>
    %c0_2 = arith.constant 0 : index
    %c0_3 = arith.constant 0 : index
    %4 = vector.load %arg3[%c0_2, %c0_3] : memref<784x512xbf16, #tpu.memory_space<vmem>>, vector<784x512xbf16>
    %cst = arith.constant dense<0.000000e+00> : vector<8x512xf32>
    %5 = tpu.matmul %3, %4, %cst {dimension_numbers = #tpu.dot_dimension_numbers<[1], [0], [0], [1], [0, 0, 1, 1], [], []>} : vector<8x784xbf16>, vector<784x512xbf16>, vector<8x512xf32> -> vector<8x512xf32>
    %c0_4 = arith.constant 0 : index
    %c0_5 = arith.constant 0 : index
    %6 = vector.load %arg4[%c0_4, %c0_5] : memref<1x512xf32, #tpu.memory_space<vmem>>, vector<1x512xf32>
    %7 = vector.broadcast %6 : vector<1x512xf32> to vector<8x512xf32>
    %8 = arith.addf %5, %7 : vector<8x512xf32>
    %cst_6 = arith.constant 0.000000e+00 : f32
    %9 = vector.broadcast %cst_6 : f32 to vector<8x512xf32>
    %10 = arith.maximumf %8, %9 : vector<8x512xf32>
    %c0_7 = arith.constant 0 : index
    %c0_8 = arith.constant 0 : index
    %11 = vector.load %arg10[%c0_7, %c0_8] : memref<8x40xf32, #tpu.memory_space<vmem>>, vector<8x40xf32>
    %12 = arith.truncf %10 : vector<8x512xf32> to vector<8x512xbf16>
    %c0_9 = arith.constant 0 : index
    %c0_10 = arith.constant 0 : index
    %13 = vector.load %arg5[%c0_9, %c0_10] : memref<512x40xbf16, #tpu.memory_space<vmem>>, vector<512x40xbf16>
    %cst_11 = arith.constant dense<0.000000e+00> : vector<8x40xf32>
    %14 = tpu.matmul %12, %13, %cst_11 {dimension_numbers = #tpu.dot_dimension_numbers<[1], [0], [0], [1], [0, 0, 1, 1], [], []>} : vector<8x512xbf16>, vector<512x40xbf16>, vector<8x40xf32> -> vector<8x40xf32>
    %15 = arith.addf %11, %14 : vector<8x40xf32>
    %c0_12 = arith.constant 0 : index
    %c0_13 = arith.constant 0 : index
    %16 = vector.load %arg10[%c0_12, %c0_13] : memref<8x40xf32, #tpu.memory_space<vmem>>, vector<8x40xf32>
    tpu.vector_store %arg10[%c0_12, %c0_13], %15 {strides = array<i32>} : memref<8x40xf32, #tpu.memory_space<vmem>>, vector<8x40xf32>,
    %c7_i32 = arith.constant 7 : i32
    %17 = arith.cmpi eq, %arg1, %c7_i32 : i32
    %18 = arith.extui %17 : i1 to i32
    %c0_i32_14 = arith.constant 0 : i32
    %19 = arith.cmpi ne, %18, %c0_i32_14 : i32
    scf.if %19 {
      %c0_15 = arith.constant 0 : index
      %c0_16 = arith.constant 0 : index
      %20 = vector.load %arg10[%c0_15, %c0_16] : memref<8x40xf32, #tpu.memory_space<vmem>>, vector<8x40xf32>
      %c0_17 = arith.constant 0 : index
      %c0_18 = arith.constant 0 : index
      %21 = vector.load %arg6[%c0_17, %c0_18] : memref<1x40xf32, #tpu.memory_space<vmem>>, vector<1x40xf32>
      %22 = vector.broadcast %21 : vector<1x40xf32> to vector<8x40xf32>
      %23 = arith.addf %20, %22 : vector<8x40xf32>
      %cst_19 = arith.constant 0.000000e+00 : f32
      %24 = vector.broadcast %cst_19 : f32 to vector<8x40xf32>
      %25 = arith.maximumf %23, %24 : vector<8x40xf32>
      %c0_20 = arith.constant 0 : index
      %c0_21 = arith.constant 0 : index
      %26 = vector.load %arg7[%c0_20, %c0_21] : memref<1x40xf32, #tpu.memory_space<vmem>>, vector<1x40xf32>
      %27 = vector.broadcast %26 : vector<1x40xf32> to vector<8x40xf32>
      %28 = arith.mulf %25, %27 : vector<8x40xf32>
      %cst_22 = arith.constant dense<0.000000e+00> : vector<8xf32>
      %29 = vector.multi_reduction <add>, %28, %cst_22 [1] : vector<8x40xf32> to vector<8xf32>
      %30 = vector.shape_cast %29 : vector<8xf32> to vector<8x1xf32>
      %c0_23 = arith.constant 0 : index
      %c0_24 = arith.constant 0 : index
      %31 = vector.load %arg8[%c0_23, %c0_24] : memref<1x1xf32, #tpu.memory_space<vmem>>, vector<1x1xf32>
      %32 = vector.broadcast %31 : vector<1x1xf32> to vector<8x1xf32>
      %33 = arith.addf %30, %32 : vector<8x1xf32>
      %cst_25 = arith.constant 0.000000e+00 : f32
      %34 = vector.broadcast %cst_25 : f32 to vector<8x1xf32>
      %35 = arith.subf %34, %33 : vector<8x1xf32>
      %36 = math.exp %35 : vector<8x1xf32>
      %cst_26 = arith.constant 1.000000e+00 : f32
      %37 = vector.broadcast %cst_26 : f32 to vector<8x1xf32>
      %38 = arith.addf %37, %36 : vector<8x1xf32>
      %cst_27 = arith.constant 1.000000e+00 : f32
      %39 = vector.broadcast %cst_27 : f32 to vector<8x1xf32>
      %40 = arith.divf %39, %38 : vector<8x1xf32>
      %c0_28 = arith.constant 0 : index
      %c0_29 = arith.constant 0 : index
      %41 = vector.load %arg9[%c0_28, %c0_29] : memref<8x1xf32, #tpu.memory_space<vmem>>, vector<8x1xf32>
      tpu.vector_store %arg9[%c0_28, %c0_29], %40 {strides = array<i32>} : memref<8x1xf32, #tpu.memory_space<vmem>>, vector<8x1xf32>,
    } else {
    }
    return
  }
  func.func @transform_0(%arg0: i32, %arg1: i32) -> (i32, i32) {
    %c0_i32 = arith.constant 0 : i32
    %c0_i32_0 = arith.constant 0 : i32
    return %arg0, %c0_i32 : i32, i32
  }
  func.func @transform_1(%arg0: i32, %arg1: i32) -> (i32, i32) {
    %c0_i32 = arith.constant 0 : i32
    %c0_i32_0 = arith.constant 0 : i32
    return %c0_i32, %arg1 : i32, i32
  }
  func.func @transform_2(%arg0: i32, %arg1: i32) -> (i32, i32) {
    %c0_i32 = arith.constant 0 : i32
    %c0_i32_0 = arith.constant 0 : i32
    return %c0_i32, %arg1 : i32, i32
  }
  func.func @transform_3(%arg0: i32, %arg1: i32) -> (i32, i32) {
    %c0_i32 = arith.constant 0 : i32
    %c0_i32_0 = arith.constant 0 : i32
    return %arg1, %c0_i32 : i32, i32
  }
  func.func @transform_4(%arg0: i32, %arg1: i32) -> (i32, i32) {
    %c0_i32 = arith.constant 0 : i32
    %c0_i32_0 = arith.constant 0 : i32
    %c0_i32_1 = arith.constant 0 : i32
    return %c0_i32, %c0_i32_0 : i32, i32
  }
  func.func @transform_5(%arg0: i32, %arg1: i32) -> (i32, i32) {
    %c0_i32 = arith.constant 0 : i32
    %c0_i32_0 = arith.constant 0 : i32
    %c0_i32_1 = arith.constant 0 : i32
    return %c0_i32, %c0_i32_0 : i32, i32
  }
  func.func @transform_6(%arg0: i32, %arg1: i32) -> (i32, i32) {
    %c0_i32 = arith.constant 0 : i32
    %c0_i32_0 = arith.constant 0 : i32
    %c0_i32_1 = arith.constant 0 : i32
    return %c0_i32, %c0_i32_0 : i32, i32
  }
  func.func @transform_7(%arg0: i32, %arg1: i32) -> (i32, i32) {
    %c0_i32 = arith.constant 0 : i32
    %c0_i32_0 = arith.constant 0 : i32
    return %arg0, %c0_i32 : i32, i32
  }
}

</mosaic_0001>

<llo_original>
// kernel: tpu_custom_call.1
$region0: #{tpu_custom_call.1}
  #allocation0 [shape = 'u32[]', space=smem, size = 0x4, offset = 0x4, fixed_abs, tag = 'smem constant byte address 0x4 - core index']
  #allocation1 [shape = 'u32[144,128]{1,0:T(1,128)}', space=vmem, size = 0x12000, scoped, tag = 'internal scratch']
  #allocation2 [shape = 'f32[8,40]{1,0:T(8,128)}', space=vmem, size = 0x1000, scoped, tag = 'scratch operand']
  #allocation3 [shape = 'f32[1,1]{1,0:T(1,128)S(1)}', space=vmem, size = 0x200, scoped, tag = 'scoped memory for tpu_custom_call.1']
  %s0 = inlined_call_operand.hbm [shape: bf16[8,784], index: 0, kind: input, shape index: {}]
  %s1 = inlined_call_operand.hbm [shape: bf16[784,4096], index: 1, kind: input, shape index: {}]
  %s2 = inlined_call_operand.hbm [shape: f32[1,4096], index: 2, kind: input, shape index: {}]
  %s3 = inlined_call_operand.vmem [shape: bf16[4096,40], index: 3, kind: input, shape index: {}]
  %s4 = inlined_call_operand.hbm [shape: f32[1,40], index: 4, kind: input, shape index: {}]
  %s5 = inlined_call_operand.hbm [shape: f32[1,40], index: 5, kind: input, shape index: {}]
  %s6 = inlined_call_operand.<no memory space> [shape: f32[1,1], index: 6, kind: input, shape index: {}]
  %s7 = inlined_call_operand.vmem [shape: f32[8,1], index: 7, kind: output, shape index: {}]
  %s8 = sld [smem:[#allocation0]]
  $region89: #{tpu_custom_call.1} parent=0
    _
  %s10 = ssub.s32 1, %s8
  %s11 = scalar_select 0, %s10, %s8
  %v12 = vstv %s6
  %13 = vst [vmem:[#allocation3] sm:$0x1] %v12
  $region1: #{tpu_custom_call.1} parent=0
    #allocation4 [shape = 'u8[14336]{0}', space=vmem, size = 0x3800, scoped, tag = 'input window, operand 0, single buffered']
    #allocation5 [shape = 's32[2]{0}', space=sflag, size = 0x8, scoped, tag = 'scoped memory for tpu_custom_call.1']
    #allocation6 [shape = 'u8[1605632]{0}', space=vmem, size = 0x188000, scoped, tag = 'input window, operand 1']
    #allocation7 [shape = 's32[2]{0}', space=sflag, size = 0x8, scoped, tag = 'scoped memory for tpu_custom_call.1']
    #allocation8 [shape = 'u8[4096]{0}', space=vmem, size = 0x1000, scoped, tag = 'input window, operand 2']
    #allocation9 [shape = 'u8[512]{0}', space=vmem, size = 0x400, scoped, tag = 'input window, operand 4, single buffered']
    #allocation10 [shape = 's32[1]{0}', space=sflag, size = 0x4, scoped, tag = 'scoped memory for tpu_custom_call.1']
    #allocation11 [shape = 'u8[512]{0}', space=vmem, size = 0x400, scoped, tag = 'input window, operand 5, single buffered']
    %14 = vsyncpa [#allocation5], 0
    %15 = vsyncpa [#allocation7], 0
    %s16 = scalar_lea.sflag [#allocation7], 1
    %17 = vsyncpa %s16, 0
    %18 = vsyncpa [#allocation10], 0
    loop: start=0, step=1, limit=10
    $region2: #{tpu_custom_call.1} parent=1 // loop_pre_header
      _
    $region3: #{tpu_custom_call.1} parent=1 // loop_header
      %s20 = sphi 0, %s24
      %p21 = scmp.ge.s32.totalorder %s20, 10
      %s27 = sphi 0, %s39
      %s28 = sphi 0, %s35
      %s29 = sphi 0, %s27
      %s30 = sphi 0, %s28
      %s31 = sphi 0, %s29
      %s32 = sphi 0, %s30
      %s42 = sphi 0, %s44
      %s45 = sphi 0, %s42
      %s46 = sphi 0, %s45
      %s62 = sphi 0, %s46
      %s68 = sphi 0, %s70
      %s71 = sphi 0, %s68
      %s72 = sphi 0, %s71
      %s88 = sphi 0, %s72
      %s94 = sphi 0, %s96
      %s97 = sphi 0, %s94
      %s98 = sphi 0, %s97
      %s114 = sphi 0, %s98
      %s120 = sphi 0, %s122
      %s123 = sphi 0, %s120
      %s124 = sphi 0, %s123
      %s140 = sphi 0, %s124
      %s144 = sphi 0, %s144
      %s146 = sphi 0, %s144
      %s147 = sphi 0, %s146
      %s161 = sphi 0, %s147
      %s165 = sphi 0, %s165
      %s167 = sphi 0, %s165
      %s168 = sphi 0, %s167
      %s182 = sphi 0, %s168
      %s186 = sphi 0, %s186
      %s188 = sphi 0, %s186
      %s189 = sphi 0, %s188
      %s203 = sphi 0, %s189
      %s209 = sphi 0, %s211
      %s212 = sphi 0, %s209
      %s213 = sphi 0, %s212
      %s229 = sphi 0, %s213
    $region4: #{tpu_custom_call.1} parent=1 // loop_header_branch
      %23 = sbr.rel (%p21) target = $region8
    $region5: #{tpu_custom_call.1} parent=1 // loop_body
      %s25 = ssub.s32 %s20, 1
      %s26 = ssub.s32 %s20, 2
      %s33 = sadd.s32 1, %s28
      %p34 = scmp.ge.s32.totalorder %s33, 8
      %s35 = scalar_select %p34, 0, %s33
      %s36 = sadd.s32 1, %s27
      %s37 = scalar_select %p34, %s36, %s27
      %p38 = scmp.ge.s32.totalorder %s37, 1
      %s39 = scalar_select %p38, 0, %s37
      %s40 = ssub.s32 %s27, %s39
      %p41 = scmp.eq.s32.totalorder %s40, 0
      %s43 = sadd.s32 %s42, 1
      %s44 = scalar_select %p41, %s42, %s43
      %p47 = pneg %p41
      %p48 = scmp.eq.s32.totalorder %s20, 7
      %p49 = por %p47, %p48
      %p50 = scmp.ne.s32.totalorder %s42, %s45
      %p51 = scmp.eq.s32.totalorder %s20, 0
      %p52 = por %p50, %p51
      %p53 = scmp.ne.s32.totalorder %s42, %s45
      %p54 = scmp.eq.s32.totalorder %s25, 7
      %p55 = por %p53, %p54
      %p56 = scmp.ne.s32.totalorder %s45, %s46
      %p57 = scmp.eq.s32.totalorder %s25, 0
      %p58 = por %p56, %p57
      %p59 = scmp.ne.s32.totalorder %s45, %s46
      %p60 = scmp.eq.s32.totalorder %s26, 7
      %p61 = por %p59, %p60
      %p63 = scmp.ne.s32.totalorder %s46, %s62
      %p64 = scmp.eq.s32.totalorder %s26, 0
      %p65 = por %p63, %p64
      %s66 = ssub.s32 %s28, %s35
      %p67 = scmp.eq.s32.totalorder %s66, 0
      %s69 = sadd.s32 %s68, 1
      %s70 = scalar_select %p67, %s68, %s69
      %p73 = pneg %p67
      %p74 = scmp.eq.s32.totalorder %s20, 7
      %p75 = por %p73, %p74
      %p76 = scmp.ne.s32.totalorder %s68, %s71
      %p77 = scmp.eq.s32.totalorder %s20, 0
      %p78 = por %p76, %p77
      %p79 = scmp.ne.s32.totalorder %s68, %s71
      %p80 = scmp.eq.s32.totalorder %s25, 7
      %p81 = por %p79, %p80
      %p82 = scmp.ne.s32.totalorder %s71, %s72
      %p83 = scmp.eq.s32.totalorder %s25, 0
      %p84 = por %p82, %p83
      %p85 = scmp.ne.s32.totalorder %s71, %s72
      %p86 = scmp.eq.s32.totalorder %s26, 7
      %p87 = por %p85, %p86
      %p89 = scmp.ne.s32.totalorder %s72, %s88
      %p90 = scmp.eq.s32.totalorder %s26, 0
      %p91 = por %p89, %p90
      %s92 = ssub.s32 %s28, %s35
      %p93 = scmp.eq.s32.totalorder %s92, 0
      %s95 = sadd.s32 %s94, 1
      %s96 = scalar_select %p93, %s94, %s95
      %p99 = pneg %p93
      %p100 = scmp.eq.s32.totalorder %s20, 7
      %p101 = por %p99, %p100
      %p102 = scmp.ne.s32.totalorder %s94, %s97
      %p103 = scmp.eq.s32.totalorder %s20, 0
      %p104 = por %p102, %p103
      %p105 = scmp.ne.s32.totalorder %s94, %s97
      %p106 = scmp.eq.s32.totalorder %s25, 7
      %p107 = por %p105, %p106
      %p108 = scmp.ne.s32.totalorder %s97, %s98
      %p109 = scmp.eq.s32.totalorder %s25, 0
      %p110 = por %p108, %p109
      %p111 = scmp.ne.s32.totalorder %s97, %s98
      %p112 = scmp.eq.s32.totalorder %s26, 7
      %p113 = por %p111, %p112
      %p115 = scmp.ne.s32.totalorder %s98, %s114
      %p116 = scmp.eq.s32.totalorder %s26, 0
      %p117 = por %p115, %p116
      %s118 = ssub.s32 %s28, %s35
      %p119 = scmp.eq.s32.totalorder %s118, 0
      %s121 = sadd.s32 %s120, 1
      %s122 = scalar_select %p119, %s120, %s121
      %p125 = pneg %p119
      %p126 = scmp.eq.s32.totalorder %s20, 7
      %p127 = por %p125, %p126
      %p128 = scmp.ne.s32.totalorder %s120, %s123
      %p129 = scmp.eq.s32.totalorder %s20, 0
      %p130 = por %p128, %p129
      %p131 = scmp.ne.s32.totalorder %s120, %s123
      %p132 = scmp.eq.s32.totalorder %s25, 7
      %p133 = por %p131, %p132
      %p134 = scmp.ne.s32.totalorder %s123, %s124
      %p135 = scmp.eq.s32.totalorder %s25, 0
      %p136 = por %p134, %p135
      %p137 = scmp.ne.s32.totalorder %s123, %s124
      %p138 = scmp.eq.s32.totalorder %s26, 7
      %p139 = por %p137, %p138
      %p141 = scmp.ne.s32.totalorder %s124, %s140
      %p142 = scmp.eq.s32.totalorder %s26, 0
      %p143 = por %p141, %p142
      %s145 = sadd.s32 %s144, 1
      %p148 = scmp.eq.s32.totalorder %s20, 7
      %p149 = scmp.ne.s32.totalorder %s144, %s146
      %p150 = scmp.eq.s32.totalorder %s20, 0
      %p151 = por %p149, %p150
      %p152 = scmp.ne.s32.totalorder %s144, %s146
      %p153 = scmp.eq.s32.totalorder %s25, 7
      %p154 = por %p152, %p153
      %p155 = scmp.ne.s32.totalorder %s146, %s147
      %p156 = scmp.eq.s32.totalorder %s25, 0
      %p157 = por %p155, %p156
      %p158 = scmp.ne.s32.totalorder %s146, %s147
      %p159 = scmp.eq.s32.totalorder %s26, 7
      %p160 = por %p158, %p159
      %p162 = scmp.ne.s32.totalorder %s147, %s161
      %p163 = scmp.eq.s32.totalorder %s26, 0
      %p164 = por %p162, %p163
      %s166 = sadd.s32 %s165, 1
      %p169 = scmp.eq.s32.totalorder %s20, 7
      %p170 = scmp.ne.s32.totalorder %s165, %s167
      %p171 = scmp.eq.s32.totalorder %s20, 0
      %p172 = por %p170, %p171
      %p173 = scmp.ne.s32.totalorder %s165, %s167
      %p174 = scmp.eq.s32.totalorder %s25, 7
      %p175 = por %p173, %p174
      %p176 = scmp.ne.s32.totalorder %s167, %s168
      %p177 = scmp.eq.s32.totalorder %s25, 0
      %p178 = por %p176, %p177
      %p179 = scmp.ne.s32.totalorder %s167, %s168
      %p180 = scmp.eq.s32.totalorder %s26, 7
      %p181 = por %p179, %p180
      %p183 = scmp.ne.s32.totalorder %s168, %s182
      %p184 = scmp.eq.s32.totalorder %s26, 0
      %p185 = por %p183, %p184
      %s187 = sadd.s32 %s186, 1
      %p190 = scmp.eq.s32.totalorder %s20, 7
      %p191 = scmp.ne.s32.totalorder %s186, %s188
      %p192 = scmp.eq.s32.totalorder %s20, 0
      %p193 = por %p191, %p192
      %p194 = scmp.ne.s32.totalorder %s186, %s188
      %p195 = scmp.eq.s32.totalorder %s25, 7
      %p196 = por %p194, %p195
      %p197 = scmp.ne.s32.totalorder %s188, %s189
      %p198 = scmp.eq.s32.totalorder %s25, 0
      %p199 = por %p197, %p198
      %p200 = scmp.ne.s32.totalorder %s188, %s189
      %p201 = scmp.eq.s32.totalorder %s26, 7
      %p202 = por %p200, %p201
      %p204 = scmp.ne.s32.totalorder %s189, %s203
      %p205 = scmp.eq.s32.totalorder %s26, 0
      %p206 = por %p204, %p205
      %s207 = ssub.s32 %s27, %s39
      %p208 = scmp.eq.s32.totalorder %s207, 0
      %s210 = sadd.s32 %s209, 1
      %s211 = scalar_select %p208, %s209, %s210
      %p214 = pneg %p208
      %p215 = scmp.eq.s32.totalorder %s20, 7
      %p216 = por %p214, %p215
      %p217 = scmp.ne.s32.totalorder %s209, %s212
      %p218 = scmp.eq.s32.totalorder %s20, 0
      %p219 = por %p217, %p218
      %p220 = scmp.ne.s32.totalorder %s209, %s212
      %p221 = scmp.eq.s32.totalorder %s25, 7
      %p222 = por %p220, %p221
      %p223 = scmp.ne.s32.totalorder %s212, %s213
      %p224 = scmp.eq.s32.totalorder %s25, 0
      %p225 = por %p223, %p224
      %p226 = scmp.ne.s32.totalorder %s212, %s213
      %p227 = scmp.eq.s32.totalorder %s26, 7
      %p228 = por %p226, %p227
      %p230 = scmp.ne.s32.totalorder %s213, %s229
      %p231 = scmp.eq.s32.totalorder %s26, 0
      %p232 = por %p230, %p231
      %p233 = scmp.le.s32.totalorder 1, %s20
      %p234 = scmp.lt.s32.totalorder %s20, 9
      %p235 = pnand %p233, %p234
      %p236 = pneg %p235
      // Predicated region
      $region9: #{tpu_custom_call.1} parent=5 // pred_check
        _
      $region10: #{tpu_custom_call.1} parent=5 // pred_check_branch
        %238 = sbr.rel (%p235) target = $region12
      $region11: #{tpu_custom_call.1} parent=5 // pred_region
        %s239 = ssub.s32 %s20, 1
        // Predicated region
        $region13: #{tpu_custom_call.1} parent=11 // pred_check
          %p240 = pneg %p58
        $region14: #{tpu_custom_call.1} parent=11 // pred_check_branch
          %242 = sbr.rel (%p240) target = $region16
        $region15: #{tpu_custom_call.1} parent=11 // pred_region
          %s244 = ssub.s32 448, 448
          %245 = vsyncadd [#allocation5], %s244
          %s246 = smul.addr %s29, 7
          %s247 = smul.addr %s246, 64
          %s248 = scalar_lea.hbm %s0, %s247
          %s250 = sshll.u32 [#allocation4], 4
          %s251 = int_to_ptr.vmem [resolvable:$true] %s250
          %253 = dma.hbm_to_vmem [thread:$0]  %s248, 448, %s251, [#allocation5]
        $region16: #{tpu_custom_call.1} parent=11 // pred_fallthru
          _
        // Predicated region
        $region17: #{tpu_custom_call.1} parent=11 // pred_check
          %p254 = pneg %p157
        $region18: #{tpu_custom_call.1} parent=11 // pred_check_branch
          %256 = sbr.rel (%p254) target = $region20
        $region19: #{tpu_custom_call.1} parent=11 // pred_region
          %s258 = ssub.s32 16, 16
          %259 = vsyncadd [#allocation10], %s258
          %s261 = sshll.u32 [#allocation9], 4
          %s262 = int_to_ptr.vmem [resolvable:$true] %s261
          %264 = dma.hbm_to_vmem [thread:$0]  %s4, 16, %s262, [#allocation10]
        $region20: #{tpu_custom_call.1} parent=11 // pred_fallthru
          _
        // Predicated region
        $region21: #{tpu_custom_call.1} parent=11 // pred_check
          %p265 = pneg %p178
        $region22: #{tpu_custom_call.1} parent=11 // pred_check_branch
          %267 = sbr.rel (%p265) target = $region24
        $region23: #{tpu_custom_call.1} parent=11 // pred_region
          %s269 = ssub.s32 16, 16
          %270 = vsyncadd [#allocation10], %s269
          %s272 = sshll.u32 [#allocation11], 4
          %s273 = int_to_ptr.vmem [resolvable:$true] %s272
          %275 = dma.hbm_to_vmem [thread:$0]  %s5, 16, %s273, [#allocation10]
        $region24: #{tpu_custom_call.1} parent=11 // pred_fallthru
          _
        // Predicated region
        $region25: #{tpu_custom_call.1} parent=11 // pred_check
          %p276 = pneg %p199
        $region26: #{tpu_custom_call.1} parent=11 // pred_check_branch
          %278 = sbr.rel (%p276) target = $region28
        $region27: #{tpu_custom_call.1} parent=11 // pred_region
          _
        $region28: #{tpu_custom_call.1} parent=11 // pred_fallthru
          _
      $region12: #{tpu_custom_call.1} parent=5 // pred_fallthru
        _
      %p279 = scmp.lt.s32.totalorder %s20, 8
      // Predicated region
      $region29: #{tpu_custom_call.1} parent=5 // pred_check
        %p280 = pneg %p279
      $region30: #{tpu_custom_call.1} parent=5 // pred_check_branch
        %282 = sbr.rel (%p280) target = $region32
      $region31: #{tpu_custom_call.1} parent=5 // pred_region
        // Predicated region
        $region33: #{tpu_custom_call.1} parent=31 // pred_check
          %p283 = pneg %p78
        $region34: #{tpu_custom_call.1} parent=31 // pred_check_branch
          %285 = sbr.rel (%p283) target = $region36
        $region35: #{tpu_custom_call.1} parent=31 // pred_region
          %s286 = sand.u32 %s20, 1
          %s287 = scalar_lea.sflag [#allocation7], %s286
          %s288 = sand.u32 %s68, 1
          %s289 = smul.addr %s288, 1568
          %s290 = scalar_lea.vmem [#allocation6], %s289
          %s291 = smul.u32 4, %s28
          %s293 = ssub.s32 25088, 25088
          %294 = vsyncadd %s287, %s293
          %s295 = smul.addr %s291, 64
          %s296 = scalar_lea.hbm %s1, %s295
          %s297 = sshll.u32 %s290, 4
          %s298 = int_to_ptr.vmem [resolvable:$true] %s297
          %303 = dma.hbm_to_vmem [thread:$0]  %s296, 25088, %s298, %s287, 2048, 256, 16
        $region36: #{tpu_custom_call.1} parent=31 // pred_fallthru
          _
        // Predicated region
        $region37: #{tpu_custom_call.1} parent=31 // pred_check
          %p304 = pneg %p104
        $region38: #{tpu_custom_call.1} parent=31 // pred_check_branch
          %306 = sbr.rel (%p304) target = $region40
        $region39: #{tpu_custom_call.1} parent=31 // pred_region
          %s307 = sand.u32 %s20, 1
          %s308 = scalar_lea.sflag [#allocation7], %s307
          %s309 = sand.u32 %s94, 1
          %s310 = smul.addr %s309, 4
          %s311 = scalar_lea.vmem [#allocation8], %s310
          %s312 = smul.u32 4, %s28
          %s314 = ssub.s32 64, 64
          %315 = vsyncadd %s308, %s314
          %s316 = smul.addr %s312, 16
          %s317 = scalar_lea.hbm %s2, %s316
          %s319 = sshll.u32 %s311, 4
          %s320 = int_to_ptr.vmem [resolvable:$true] %s319
          %322 = dma.hbm_to_vmem [thread:$0]  %s317, 64, %s320, %s308
        $region40: #{tpu_custom_call.1} parent=31 // pred_fallthru
          _
        // Predicated region
        $region41: #{tpu_custom_call.1} parent=31 // pred_check
          %p323 = pneg %p130
        $region42: #{tpu_custom_call.1} parent=31 // pred_check_branch
          %325 = sbr.rel (%p323) target = $region44
        $region43: #{tpu_custom_call.1} parent=31 // pred_region
          %s326 = smul.u32 64, %s28
          %p327 = scmp.lt.s32.totalorder %s326, 511
          %s328 = scalar_select %p327, %s326, 511
          %s329 = smul.addr %s328, 4
          %s330 = scalar_lea.vmem %s3, %s329
          %s331 = smul.u32 64, %s28
        $region44: #{tpu_custom_call.1} parent=31 // pred_fallthru
          _
      $region32: #{tpu_custom_call.1} parent=5 // pred_fallthru
        _
      %p332 = scmp.le.s32.totalorder 1, %s20
      %p333 = scmp.lt.s32.totalorder %s20, 9
      %p334 = pnand %p332, %p333
      %p335 = pneg %p334
      // Predicated region
      $region45: #{tpu_custom_call.1} parent=5 // pred_check
        _
      $region46: #{tpu_custom_call.1} parent=5 // pred_check_branch
        %337 = sbr.rel (%p334) target = $region48
      $region47: #{tpu_custom_call.1} parent=5 // pred_region
        %s338 = ssub.s32 %s20, 1
        // Predicated region
        $region49: #{tpu_custom_call.1} parent=47 // pred_check
          %p339 = pneg %p58
        $region50: #{tpu_custom_call.1} parent=47 // pred_check_branch
          %341 = sbr.rel (%p339) target = $region52
        $region51: #{tpu_custom_call.1} parent=47 // pred_region
          %342 = dma.done [#allocation5], 448
        $region52: #{tpu_custom_call.1} parent=47 // pred_fallthru
          _
        %s343 = sand.u32 %s25, 1
        %s344 = scalar_lea.sflag [#allocation7], %s343
        %s345 = sand.u32 %s71, 1
        %s346 = smul.addr %s345, 1568
        %s347 = scalar_lea.vmem [#allocation6], %s346
        // Predicated region
        $region53: #{tpu_custom_call.1} parent=47 // pred_check
          %p348 = pneg %p84
        $region54: #{tpu_custom_call.1} parent=47 // pred_check_branch
          %350 = sbr.rel (%p348) target = $region56
        $region55: #{tpu_custom_call.1} parent=47 // pred_region
          %351 = dma.done %s344, 25088
        $region56: #{tpu_custom_call.1} parent=47 // pred_fallthru
          _
        %s352 = sand.u32 %s25, 1
        %s353 = scalar_lea.sflag [#allocation7], %s352
        %s354 = sand.u32 %s97, 1
        %s355 = smul.addr %s354, 4
        %s356 = scalar_lea.vmem [#allocation8], %s355
        // Predicated region
        $region57: #{tpu_custom_call.1} parent=47 // pred_check
          %p357 = pneg %p110
        $region58: #{tpu_custom_call.1} parent=47 // pred_check_branch
          %359 = sbr.rel (%p357) target = $region60
        $region59: #{tpu_custom_call.1} parent=47 // pred_region
          %360 = dma.done %s353, 64
        $region60: #{tpu_custom_call.1} parent=47 // pred_fallthru
          _
        // Predicated region
        $region61: #{tpu_custom_call.1} parent=47 // pred_check
          %p361 = pneg %p157
        $region62: #{tpu_custom_call.1} parent=47 // pred_check_branch
          %363 = sbr.rel (%p361) target = $region64
        $region63: #{tpu_custom_call.1} parent=47 // pred_region
          %364 = dma.done [#allocation10], 16
        $region64: #{tpu_custom_call.1} parent=47 // pred_fallthru
          _
        // Predicated region
        $region65: #{tpu_custom_call.1} parent=47 // pred_check
          %p365 = pneg %p178
        $region66: #{tpu_custom_call.1} parent=47 // pred_check_branch
          %367 = sbr.rel (%p365) target = $region68
        $region67: #{tpu_custom_call.1} parent=47 // pred_region
          %368 = dma.done [#allocation10], 16
        $region68: #{tpu_custom_call.1} parent=47 // pred_fallthru
          _
        %p369 = pneg %p58
        %p370 = pneg %p55
        %s371 = sand.u32 %s25, 1
        %s372 = scalar_lea.sflag [#allocation7], %s371
        %s373 = sand.u32 %s71, 1
        %s374 = smul.addr %s373, 1568
        %s375 = scalar_lea.vmem [#allocation6], %s374
        %p376 = pneg %p84
        %p377 = pneg %p81
        %s378 = sand.u32 %s25, 1
        %s379 = scalar_lea.sflag [#allocation7], %s378
        %s380 = sand.u32 %s97, 1
        %s381 = smul.addr %s380, 4
        %s382 = scalar_lea.vmem [#allocation8], %s381
        %p383 = pneg %p110
        %p384 = pneg %p107
        %s385 = smul.u32 64, %s30
        %p386 = scmp.lt.s32.totalorder %s385, 511
        %s387 = scalar_select %p386, %s385, 511
        %s388 = smul.addr %s387, 4
        %s389 = scalar_lea.vmem %s3, %s388
        %p390 = pneg %p136
        %p391 = pneg %p133
        %p392 = pneg %p157
        %p393 = pneg %p154
        %p394 = pneg %p178
        %p395 = pneg %p175
        %p396 = pneg %p199
        %p397 = pneg %p196
        %p398 = pneg %p225
        %p399 = pneg %p222
        %p400 = scmp.lt.s32.totalorder %s29, 0
        %s401 = scalar_select %p400, %s29, 0
        %s402 = smul.addr %s401, 8
        %s403 = scalar_lea.vmem %s7, %s402
        %s404 = smul.u32 4, %s30
        %s405 = smul.u32 4, %s30
        %s406 = smul.u32 64, %s30
        %p407 = scmp.lt.s32.totalorder %s406, 511
        %s408 = scalar_select %p407, %s406, 511
        %s409 = smul.addr %s408, 4
        %s410 = scalar_lea.vmem %s3, %s409
        %s411 = smul.u32 64, %s30
        %p412 = scmp.lt.s32.totalorder %s29, 0
        %s413 = scalar_select %p412, %s29, 0
        %s414 = smul.addr %s413, 8
        %s415 = scalar_lea.vmem %s7, %s414
        %p417 = scmp.eq.s32.totalorder %s30, 0
        // Predicated region
        $region69: #{tpu_custom_call.1} parent=47 // pred_check
          %p418 = pneg %p417
        $region70: #{tpu_custom_call.1} parent=47 // pred_check_branch
          %420 = sbr.rel (%p418) target = $region72
        $region71: #{tpu_custom_call.1} parent=47 // pred_region
          %vm421 = vcmask 326656
          %422 = vst.msk [vmem:[#allocation2] sm:$0xff] %vm421, 0.0
        $region72: #{tpu_custom_call.1} parent=47 // pred_fallthru
          _
        %v423 = vld [vmem:[#allocation4] sm:$0xff]
        %v424 = vld [vmem:[#allocation4 + $0x8] sm:$0xff]
        %v425 = vld [vmem:[#allocation4 + $0x10] sm:$0xff]
        %v426 = vld [vmem:[#allocation4 + $0x18] sm:$0xf]
        %v427 = vld [vmem:[%s347] sm:$0xff]
        %v428 = vld [vmem:[%s347 + $0x8] sm:$0xff]
        %v429 = vld [vmem:[%s347 + $0x10] sm:$0xff]
        %v430 = vld [vmem:[%s347 + $0x18] sm:$0xff]
        %v431 = vld [vmem:[%s347 + $0x20] sm:$0xff]
        %v432 = vld [vmem:[%s347 + $0x28] sm:$0xff]
        %v433 = vld [vmem:[%s347 + $0x30] sm:$0xff]
        %v434 = vld [vmem:[%s347 + $0x38] sm:$0xff]
        %v435 = vld [vmem:[%s347 + $0x40] sm:$0xff]
        %v436 = vld [vmem:[%s347 + $0x48] sm:$0xff]
        %v437 = vld [vmem:[%s347 + $0x50] sm:$0xff]
        %v438 = vld [vmem:[%s347 + $0x58] sm:$0xff]
        %v439 = vld [vmem:[%s347 + $0x60] sm:$0xff]
        %v440 = vld [vmem:[%s347 + $0x68] sm:$0xff]
        %v441 = vld [vmem:[%s347 + $0x70] sm:$0xff]
        %v442 = vld [vmem:[%s347 + $0x78] sm:$0xff]
        %v443 = vld [vmem:[%s347 + $0x80] sm:$0xff]
        %v444 = vld [vmem:[%s347 + $0x88] sm:$0xff]
        %v445 = vld [vmem:[%s347 + $0x90] sm:$0xff]
        %v446 = vld [vmem:[%s347 + $0x98] sm:$0xff]
        %v447 = vld [vmem:[%s347 + $0xa0] sm:$0xff]
        %v448 = vld [vmem:[%s347 + $0xa8] sm:$0xff]
        %v449 = vld [vmem:[%s347 + $0xb0] sm:$0xff]
        %v450 = vld [vmem:[%s347 + $0xb8] sm:$0xff]
        %v451 = vld [vmem:[%s347 + $0xc0] sm:$0xff]
        %v452 = vld [vmem:[%s347 + $0xc8] sm:$0xff]
        %v453 = vld [vmem:[%s347 + $0xd0] sm:$0xff]
        %v454 = vld [vmem:[%s347 + $0xd8] sm:$0xff]
        %v455 = vld [vmem:[%s347 + $0xe0] sm:$0xff]
        %v456 = vld [vmem:[%s347 + $0xe8] sm:$0xff]
        %v457 = vld [vmem:[%s347 + $0xf0] sm:$0xff]
        %v458 = vld [vmem:[%s347 + $0xf8] sm:$0xff]
        %v459 = vld [vmem:[%s347 + $0x100] sm:$0xff]
        %v460 = vld [vmem:[%s347 + $0x108] sm:$0xff]
        %v461 = vld [vmem:[%s347 + $0x110] sm:$0xff]
        %v462 = vld [vmem:[%s347 + $0x118] sm:$0xff]
        %v463 = vld [vmem:[%s347 + $0x120] sm:$0xff]
        %v464 = vld [vmem:[%s347 + $0x128] sm:$0xff]
        %v465 = vld [vmem:[%s347 + $0x130] sm:$0xff]
        %v466 = vld [vmem:[%s347 + $0x138] sm:$0xff]
        %v467 = vld [vmem:[%s347 + $0x140] sm:$0xff]
        %v468 = vld [vmem:[%s347 + $0x148] sm:$0xff]
        %v469 = vld [vmem:[%s347 + $0x150] sm:$0xff]
        %v470 = vld [vmem:[%s347 + $0x158] sm:$0xff]
        %v471 = vld [vmem:[%s347 + $0x160] sm:$0xff]
        %v472 = vld [vmem:[%s347 + $0x168] sm:$0xff]
        %v473 = vld [vmem:[%s347 + $0x170] sm:$0xff]
        %v474 = vld [vmem:[%s347 + $0x178] sm:$0xff]
        %v475 = vld [vmem:[%s347 + $0x180] sm:$0xff]
        %v476 = vld [vmem:[%s347 + $0x188] sm:$0xff]
        %v477 = vld [vmem:[%s347 + $0x190] sm:$0xff]
        %v478 = vld [vmem:[%s347 + $0x198] sm:$0xff]
        %v479 = vld [vmem:[%s347 + $0x1a0] sm:$0xff]
        %v480 = vld [vmem:[%s347 + $0x1a8] sm:$0xff]
        %v481 = vld [vmem:[%s347 + $0x1b0] sm:$0xff]
        %v482 = vld [vmem:[%s347 + $0x1b8] sm:$0xff]
        %v483 = vld [vmem:[%s347 + $0x1c0] sm:$0xff]
        %v484 = vld [vmem:[%s347 + $0x1c8] sm:$0xff]
        %v485 = vld [vmem:[%s347 + $0x1d0] sm:$0xff]
        %v486 = vld [vmem:[%s347 + $0x1d8] sm:$0xff]
        %v487 = vld [vmem:[%s347 + $0x1e0] sm:$0xff]
        %v488 = vld [vmem:[%s347 + $0x1e8] sm:$0xff]
        %v489 = vld [vmem:[%s347 + $0x1f0] sm:$0xff]
        %v490 = vld [vmem:[%s347 + $0x1f8] sm:$0xff]
        %v491 = vld [vmem:[%s347 + $0x200] sm:$0xff]
        %v492 = vld [vmem:[%s347 + $0x208] sm:$0xff]
        %v493 = vld [vmem:[%s347 + $0x210] sm:$0xff]
        %v494 = vld [vmem:[%s347 + $0x218] sm:$0xff]
        %v495 = vld [vmem:[%s347 + $0x220] sm:$0xff]
        %v496 = vld [vmem:[%s347 + $0x228] sm:$0xff]
        %v497 = vld [vmem:[%s347 + $0x230] sm:$0xff]
        %v498 = vld [vmem:[%s347 + $0x238] sm:$0xff]
        %v499 = vld [vmem:[%s347 + $0x240] sm:$0xff]
        %v500 = vld [vmem:[%s347 + $0x248] sm:$0xff]
        %v501 = vld [vmem:[%s347 + $0x250] sm:$0xff]
        %v502 = vld [vmem:[%s347 + $0x258] sm:$0xff]
        %v503 = vld [vmem:[%s347 + $0x260] sm:$0xff]
        %v504 = vld [vmem:[%s347 + $0x268] sm:$0xff]
        %v505 = vld [vmem:[%s347 + $0x270] sm:$0xff]
        %v506 = vld [vmem:[%s347 + $0x278] sm:$0xff]
        %v507 = vld [vmem:[%s347 + $0x280] sm:$0xff]
        %v508 = vld [vmem:[%s347 + $0x288] sm:$0xff]
        %v509 = vld [vmem:[%s347 + $0x290] sm:$0xff]
        %v510 = vld [vmem:[%s347 + $0x298] sm:$0xff]
        %v511 = vld [vmem:[%s347 + $0x2a0] sm:$0xff]
        %v512 = vld [vmem:[%s347 + $0x2a8] sm:$0xff]
        %v513 = vld [vmem:[%s347 + $0x2b0] sm:$0xff]
        %v514 = vld [vmem:[%s347 + $0x2b8] sm:$0xff]
        %v515 = vld [vmem:[%s347 + $0x2c0] sm:$0xff]
        %v516 = vld [vmem:[%s347 + $0x2c8] sm:$0xff]
        %v517 = vld [vmem:[%s347 + $0x2d0] sm:$0xff]
        %v518 = vld [vmem:[%s347 + $0x2d8] sm:$0xff]
        %v519 = vld [vmem:[%s347 + $0x2e0] sm:$0xff]
        %v520 = vld [vmem:[%s347 + $0x2e8] sm:$0xff]
        %v521 = vld [vmem:[%s347 + $0x2f0] sm:$0xff]
        %v522 = vld [vmem:[%s347 + $0x2f8] sm:$0xff]
        %v523 = vld [vmem:[%s347 + $0x300] sm:$0xff]
        %v524 = vld [vmem:[%s347 + $0x308] sm:$0xff]
        %v525 = vld [vmem:[%s347 + $0x310] sm:$0xff]
        %v526 = vld [vmem:[%s347 + $0x318] sm:$0xff]
        %v527 = vld [vmem:[%s347 + $0x320] sm:$0xff]
        %v528 = vld [vmem:[%s347 + $0x328] sm:$0xff]
        %v529 = vld [vmem:[%s347 + $0x330] sm:$0xff]
        %v530 = vld [vmem:[%s347 + $0x338] sm:$0xff]
        %v531 = vld [vmem:[%s347 + $0x340] sm:$0xff]
        %v532 = vld [vmem:[%s347 + $0x348] sm:$0xff]
        %v533 = vld [vmem:[%s347 + $0x350] sm:$0xff]
        %v534 = vld [vmem:[%s347 + $0x358] sm:$0xff]
        %v535 = vld [vmem:[%s347 + $0x360] sm:$0xff]
        %v536 = vld [vmem:[%s347 + $0x368] sm:$0xff]
        %v537 = vld [vmem:[%s347 + $0x370] sm:$0xff]
        %v538 = vld [vmem:[%s347 + $0x378] sm:$0xff]
        %v539 = vld [vmem:[%s347 + $0x380] sm:$0xff]
        %v540 = vld [vmem:[%s347 + $0x388] sm:$0xff]
        %v541 = vld [vmem:[%s347 + $0x390] sm:$0xff]
        %v542 = vld [vmem:[%s347 + $0x398] sm:$0xff]
        %v543 = vld [vmem:[%s347 + $0x3a0] sm:$0xff]
        %v544 = vld [vmem:[%s347 + $0x3a8] sm:$0xff]
        %v545 = vld [vmem:[%s347 + $0x3b0] sm:$0xff]
        %v546 = vld [vmem:[%s347 + $0x3b8] sm:$0xff]
        %v547 = vld [vmem:[%s347 + $0x3c0] sm:$0xff]
        %v548 = vld [vmem:[%s347 + $0x3c8] sm:$0xff]
        %v549 = vld [vmem:[%s347 + $0x3d0] sm:$0xff]
        %v550 = vld [vmem:[%s347 + $0x3d8] sm:$0xff]
        %v551 = vld [vmem:[%s347 + $0x3e0] sm:$0xff]
        %v552 = vld [vmem:[%s347 + $0x3e8] sm:$0xff]
        %v553 = vld [vmem:[%s347 + $0x3f0] sm:$0xff]
        %v554 = vld [vmem:[%s347 + $0x3f8] sm:$0xff]
        %v555 = vld [vmem:[%s347 + $0x400] sm:$0xff]
        %v556 = vld [vmem:[%s347 + $0x408] sm:$0xff]
        %v557 = vld [vmem:[%s347 + $0x410] sm:$0xff]
        %v558 = vld [vmem:[%s347 + $0x418] sm:$0xff]
        %v559 = vld [vmem:[%s347 + $0x420] sm:$0xff]
        %v560 = vld [vmem:[%s347 + $0x428] sm:$0xff]
        %v561 = vld [vmem:[%s347 + $0x430] sm:$0xff]
        %v562 = vld [vmem:[%s347 + $0x438] sm:$0xff]
        %v563 = vld [vmem:[%s347 + $0x440] sm:$0xff]
        %v564 = vld [vmem:[%s347 + $0x448] sm:$0xff]
        %v565 = vld [vmem:[%s347 + $0x450] sm:$0xff]
        %v566 = vld [vmem:[%s347 + $0x458] sm:$0xff]
        %v567 = vld [vmem:[%s347 + $0x460] sm:$0xff]
        %v568 = vld [vmem:[%s347 + $0x468] sm:$0xff]
        %v569 = vld [vmem:[%s347 + $0x470] sm:$0xff]
        %v570 = vld [vmem:[%s347 + $0x478] sm:$0xff]
        %v571 = vld [vmem:[%s347 + $0x480] sm:$0xff]
        %v572 = vld [vmem:[%s347 + $0x488] sm:$0xff]
        %v573 = vld [vmem:[%s347 + $0x490] sm:$0xff]
        %v574 = vld [vmem:[%s347 + $0x498] sm:$0xff]
        %v575 = vld [vmem:[%s347 + $0x4a0] sm:$0xff]
        %v576 = vld [vmem:[%s347 + $0x4a8] sm:$0xff]
        %v577 = vld [vmem:[%s347 + $0x4b0] sm:$0xff]
        %v578 = vld [vmem:[%s347 + $0x4b8] sm:$0xff]
        %v579 = vld [vmem:[%s347 + $0x4c0] sm:$0xff]
        %v580 = vld [vmem:[%s347 + $0x4c8] sm:$0xff]
        %v581 = vld [vmem:[%s347 + $0x4d0] sm:$0xff]
        %v582 = vld [vmem:[%s347 + $0x4d8] sm:$0xff]
        %v583 = vld [vmem:[%s347 + $0x4e0] sm:$0xff]
        %v584 = vld [vmem:[%s347 + $0x4e8] sm:$0xff]
        %v585 = vld [vmem:[%s347 + $0x4f0] sm:$0xff]
        %v586 = vld [vmem:[%s347 + $0x4f8] sm:$0xff]
        %v587 = vld [vmem:[%s347 + $0x500] sm:$0xff]
        %v588 = vld [vmem:[%s347 + $0x508] sm:$0xff]
        %v589 = vld [vmem:[%s347 + $0x510] sm:$0xff]
        %v590 = vld [vmem:[%s347 + $0x518] sm:$0xff]
        %v591 = vld [vmem:[%s347 + $0x520] sm:$0xff]
        %v592 = vld [vmem:[%s347 + $0x528] sm:$0xff]
        %v593 = vld [vmem:[%s347 + $0x530] sm:$0xff]
        %v594 = vld [vmem:[%s347 + $0x538] sm:$0xff]
        %v595 = vld [vmem:[%s347 + $0x540] sm:$0xff]
        %v596 = vld [vmem:[%s347 + $0x548] sm:$0xff]
        %v597 = vld [vmem:[%s347 + $0x550] sm:$0xff]
        %v598 = vld [vmem:[%s347 + $0x558] sm:$0xff]
        %v599 = vld [vmem:[%s347 + $0x560] sm:$0xff]
        %v600 = vld [vmem:[%s347 + $0x568] sm:$0xff]
        %v601 = vld [vmem:[%s347 + $0x570] sm:$0xff]
        %v602 = vld [vmem:[%s347 + $0x578] sm:$0xff]
        %v603 = vld [vmem:[%s347 + $0x580] sm:$0xff]
        %v604 = vld [vmem:[%s347 + $0x588] sm:$0xff]
        %v605 = vld [vmem:[%s347 + $0x590] sm:$0xff]
        %v606 = vld [vmem:[%s347 + $0x598] sm:$0xff]
        %v607 = vld [vmem:[%s347 + $0x5a0] sm:$0xff]
        %v608 = vld [vmem:[%s347 + $0x5a8] sm:$0xff]
        %v609 = vld [vmem:[%s347 + $0x5b0] sm:$0xff]
        %v610 = vld [vmem:[%s347 + $0x5b8] sm:$0xff]
        %v611 = vld [vmem:[%s347 + $0x5c0] sm:$0xff]
        %v612 = vld [vmem:[%s347 + $0x5c8] sm:$0xff]
        %v613 = vld [vmem:[%s347 + $0x5d0] sm:$0xff]
        %v614 = vld [vmem:[%s347 + $0x5d8] sm:$0xff]
        %v615 = vld [vmem:[%s347 + $0x5e0] sm:$0xff]
        %v616 = vld [vmem:[%s347 + $0x5e8] sm:$0xff]
        %v617 = vld [vmem:[%s347 + $0x5f0] sm:$0xff]
        %v618 = vld [vmem:[%s347 + $0x5f8] sm:$0xff]
        %v619 = vld [vmem:[%s347 + $0x600] sm:$0xff]
        %v620 = vld [vmem:[%s347 + $0x608] sm:$0xff]
        %v621 = vld [vmem:[%s347 + $0x610] sm:$0xff]
        %v622 = vld [vmem:[%s347 + $0x618] sm:$0xff]
        %v623 = vld [vmem:[%s356] sm:$0xf]
        %v625 = vlaneseq
        %v626 = vshrl.u32 %v625, 7
        %v627 = vsub.s32 0, %v626
        %v628 = vrot.slane %v623, %v627
        %v629 = vlaneseq
        %v630 = vshrl.u32 %v629, 7
        %v631 = vsub.s32 1, %v630
        %v632 = vrot.slane %v623, %v631
        %v633 = vlaneseq
        %v634 = vshrl.u32 %v633, 7
        %v635 = vsub.s32 2, %v634
        %v636 = vrot.slane %v623, %v635
        %v637 = vlaneseq
        %v638 = vshrl.u32 %v637, 7
        %v639 = vsub.s32 3, %v638
        %v640 = vrot.slane %v623, %v639
        %v649 = vunpack.c.l.b16 %v423
        %v650 = vunpack.c.h.b16 %v423
        %v651 = vunpack.c.l.b16 %v424
        %v652 = vunpack.c.h.b16 %v424
        %v653 = vunpack.c.l.b16 %v425
        %v654 = vunpack.c.h.b16 %v425
        %v655 = vunpack.c.l.b16 %v426
        %v656 = vpack.c.b16 %v649, %v649
        %v657 = vpack.c.b16 %v650, %v650
        %v658 = vpack.c.b16 %v651, %v651
        %v659 = vpack.c.b16 %v652, %v652
        %v660 = vpack.c.b16 %v653, %v653
        %v661 = vpack.c.b16 %v654, %v654
        %v662 = vpack.c.b16 %v655, %v655
        %v865 = vunpack.c.l.b16 %v427
        %v866 = vunpack.c.h.b16 %v427
        %v867 = vunpack.c.l.b16 %v428
        %v868 = vunpack.c.h.b16 %v428
        %v869 = vunpack.c.l.b16 %v429
        %v870 = vunpack.c.h.b16 %v429
        %v871 = vunpack.c.l.b16 %v430
        %v872 = vunpack.c.h.b16 %v430
        %v873 = vunpack.c.l.b16 %v431
        %v874 = vunpack.c.h.b16 %v431
        %v875 = vunpack.c.l.b16 %v432
        %v876 = vunpack.c.h.b16 %v432
        %v877 = vunpack.c.l.b16 %v433
        %v878 = vunpack.c.h.b16 %v433
        %v879 = vunpack.c.l.b16 %v434
        %v880 = vunpack.c.h.b16 %v434
        %v881 = vunpack.c.l.b16 %v435
        %v882 = vunpack.c.h.b16 %v435
        %v883 = vunpack.c.l.b16 %v436
        %v884 = vunpack.c.h.b16 %v436
        %v885 = vunpack.c.l.b16 %v437
        %v886 = vunpack.c.h.b16 %v437
        %v887 = vunpack.c.l.b16 %v438
        %v888 = vunpack.c.h.b16 %v438
        %v889 = vunpack.c.l.b16 %v439
        %v890 = vunpack.c.h.b16 %v439
        %v891 = vunpack.c.l.b16 %v440
        %v892 = vunpack.c.h.b16 %v440
        %v893 = vunpack.c.l.b16 %v441
        %v894 = vunpack.c.h.b16 %v441
        %v895 = vunpack.c.l.b16 %v442
        %v896 = vunpack.c.h.b16 %v442
        %v897 = vunpack.c.l.b16 %v443
        %v898 = vunpack.c.h.b16 %v443
        %v899 = vunpack.c.l.b16 %v444
        %v900 = vunpack.c.h.b16 %v444
        %v901 = vunpack.c.l.b16 %v445
        %v902 = vunpack.c.h.b16 %v445
        %v903 = vunpack.c.l.b16 %v446
        %v904 = vunpack.c.h.b16 %v446
        %v905 = vunpack.c.l.b16 %v447
        %v906 = vunpack.c.h.b16 %v447
        %v907 = vunpack.c.l.b16 %v448
        %v908 = vunpack.c.h.b16 %v448
        %v909 = vunpack.c.l.b16 %v449
        %v910 = vunpack.c.h.b16 %v449
        %v911 = vunpack.c.l.b16 %v450
        %v912 = vunpack.c.h.b16 %v450
        %v913 = vunpack.c.l.b16 %v451
        %v914 = vunpack.c.h.b16 %v451
        %v915 = vunpack.c.l.b16 %v452
        %v916 = vunpack.c.h.b16 %v452
        %v917 = vunpack.c.l.b16 %v453
        %v918 = vunpack.c.h.b16 %v453
        %v919 = vunpack.c.l.b16 %v454
        %v920 = vunpack.c.h.b16 %v454
        %v921 = vunpack.c.l.b16 %v455
        %v922 = vunpack.c.h.b16 %v455
        %v923 = vunpack.c.l.b16 %v456
        %v924 = vunpack.c.h.b16 %v456
        %v925 = vunpack.c.l.b16 %v457
        %v926 = vunpack.c.h.b16 %v457
        %v927 = vunpack.c.l.b16 %v458
        %v928 = vunpack.c.h.b16 %v458
        %v929 = vunpack.c.l.b16 %v459
        %v930 = vunpack.c.h.b16 %v459
        %v931 = vunpack.c.l.b16 %v460
        %v932 = vunpack.c.h.b16 %v460
        %v933 = vunpack.c.l.b16 %v461
        %v934 = vunpack.c.h.b16 %v461
        %v935 = vunpack.c.l.b16 %v462
        %v936 = vunpack.c.h.b16 %v462
        %v937 = vunpack.c.l.b16 %v463
        %v938 = vunpack.c.h.b16 %v463
        %v939 = vunpack.c.l.b16 %v464
        %v940 = vunpack.c.h.b16 %v464
        %v941 = vunpack.c.l.b16 %v465
        %v942 = vunpack.c.h.b16 %v465
        %v943 = vunpack.c.l.b16 %v466
        %v944 = vunpack.c.h.b16 %v466
        %v945 = vunpack.c.l.b16 %v467
        %v946 = vunpack.c.h.b16 %v467
        %v947 = vunpack.c.l.b16 %v468
        %v948 = vunpack.c.h.b16 %v468
        %v949 = vunpack.c.l.b16 %v469
        %v950 = vunpack.c.h.b16 %v469
        %v951 = vunpack.c.l.b16 %v470
        %v952 = vunpack.c.h.b16 %v470
        %v953 = vunpack.c.l.b16 %v471
        %v954 = vunpack.c.h.b16 %v471
        %v955 = vunpack.c.l.b16 %v472
        %v956 = vunpack.c.h.b16 %v472
        %v957 = vunpack.c.l.b16 %v473
        %v958 = vunpack.c.h.b16 %v473
        %v959 = vunpack.c.l.b16 %v474
        %v960 = vunpack.c.h.b16 %v474
        %v961 = vunpack.c.l.b16 %v475
        %v962 = vunpack.c.h.b16 %v475
        %v963 = vunpack.c.l.b16 %v476
        %v964 = vunpack.c.h.b16 %v476
        %v965 = vunpack.c.l.b16 %v477
        %v966 = vunpack.c.h.b16 %v477
        %v967 = vunpack.c.l.b16 %v478
        %v968 = vunpack.c.h.b16 %v478
        %v969 = vunpack.c.l.b16 %v479
        %v970 = vunpack.c.h.b16 %v479
        %v971 = vunpack.c.l.b16 %v480
        %v972 = vunpack.c.h.b16 %v480
        %v973 = vunpack.c.l.b16 %v481
        %v974 = vunpack.c.h.b16 %v481
        %v975 = vunpack.c.l.b16 %v482
        %v976 = vunpack.c.h.b16 %v482
        %v977 = vunpack.c.l.b16 %v483
        %v978 = vunpack.c.h.b16 %v483
        %v979 = vunpack.c.l.b16 %v484
        %v980 = vunpack.c.h.b16 %v484
        %v981 = vunpack.c.l.b16 %v485
        %v982 = vunpack.c.h.b16 %v485
        %v983 = vunpack.c.l.b16 %v486
        %v984 = vunpack.c.h.b16 %v486
        %v985 = vunpack.c.l.b16 %v487
        %v986 = vunpack.c.h.b16 %v487
        %v987 = vunpack.c.l.b16 %v488
        %v988 = vunpack.c.h.b16 %v488
        %v989 = vunpack.c.l.b16 %v489
        %v990 = vunpack.c.h.b16 %v489
        %v991 = vunpack.c.l.b16 %v490
        %v992 = vunpack.c.h.b16 %v490
        %v993 = vunpack.c.l.b16 %v491
        %v994 = vunpack.c.h.b16 %v491
        %v995 = vunpack.c.l.b16 %v492
        %v996 = vunpack.c.h.b16 %v492
        %v997 = vunpack.c.l.b16 %v493
        %v998 = vunpack.c.h.b16 %v493
        %v999 = vunpack.c.l.b16 %v494
        %v1000 = vunpack.c.h.b16 %v494
        %v1001 = vunpack.c.l.b16 %v495
        %v1002 = vunpack.c.h.b16 %v495
        %v1003 = vunpack.c.l.b16 %v496
        %v1004 = vunpack.c.h.b16 %v496
        %v1005 = vunpack.c.l.b16 %v497
        %v1006 = vunpack.c.h.b16 %v497
        %v1007 = vunpack.c.l.b16 %v498
        %v1008 = vunpack.c.h.b16 %v498
        %v1009 = vunpack.c.l.b16 %v499
        %v1010 = vunpack.c.h.b16 %v499
        %v1011 = vunpack.c.l.b16 %v500
        %v1012 = vunpack.c.h.b16 %v500
        %v1013 = vunpack.c.l.b16 %v501
        %v1014 = vunpack.c.h.b16 %v501
        %v1015 = vunpack.c.l.b16 %v502
        %v1016 = vunpack.c.h.b16 %v502
        %v1017 = vunpack.c.l.b16 %v503
        %v1018 = vunpack.c.h.b16 %v503
        %v1019 = vunpack.c.l.b16 %v504
        %v1020 = vunpack.c.h.b16 %v504
        %v1021 = vunpack.c.l.b16 %v505
        %v1022 = vunpack.c.h.b16 %v505
        %v1023 = vunpack.c.l.b16 %v506
        %v1024 = vunpack.c.h.b16 %v506
        %v1025 = vunpack.c.l.b16 %v507
        %v1026 = vunpack.c.h.b16 %v507
        %v1027 = vunpack.c.l.b16 %v508
        %v1028 = vunpack.c.h.b16 %v508
        %v1029 = vunpack.c.l.b16 %v509
        %v1030 = vunpack.c.h.b16 %v509
        %v1031 = vunpack.c.l.b16 %v510
        %v1032 = vunpack.c.h.b16 %v510
        %v1033 = vunpack.c.l.b16 %v511
        %v1034 = vunpack.c.h.b16 %v511
        %v1035 = vunpack.c.l.b16 %v512
        %v1036 = vunpack.c.h.b16 %v512
        %v1037 = vunpack.c.l.b16 %v513
        %v1038 = vunpack.c.h.b16 %v513
        %v1039 = vunpack.c.l.b16 %v514
        %v1040 = vunpack.c.h.b16 %v514
        %v1041 = vunpack.c.l.b16 %v515
        %v1042 = vunpack.c.h.b16 %v515
        %v1043 = vunpack.c.l.b16 %v516
        %v1044 = vunpack.c.h.b16 %v516
        %v1045 = vunpack.c.l.b16 %v517
        %v1046 = vunpack.c.h.b16 %v517
        %v1047 = vunpack.c.l.b16 %v518
        %v1048 = vunpack.c.h.b16 %v518
        %v1049 = vunpack.c.l.b16 %v519
        %v1050 = vunpack.c.h.b16 %v519
        %v1051 = vunpack.c.l.b16 %v520
        %v1052 = vunpack.c.h.b16 %v520
        %v1053 = vunpack.c.l.b16 %v521
        %v1054 = vunpack.c.h.b16 %v521
        %v1055 = vunpack.c.l.b16 %v522
        %v1056 = vunpack.c.h.b16 %v522
        %v1057 = vunpack.c.l.b16 %v523
        %v1058 = vunpack.c.h.b16 %v523
        %v1059 = vunpack.c.l.b16 %v524
        %v1060 = vunpack.c.h.b16 %v524
        %v1061 = vunpack.c.l.b16 %v525
        %v1062 = vunpack.c.h.b16 %v525
        %v1063 = vunpack.c.l.b16 %v526
        %v1064 = vunpack.c.h.b16 %v526
        %v1065 = vunpack.c.l.b16 %v527
        %v1066 = vunpack.c.h.b16 %v527
        %v1067 = vunpack.c.l.b16 %v528
        %v1068 = vunpack.c.h.b16 %v528
        %v1069 = vunpack.c.l.b16 %v529
        %v1070 = vunpack.c.h.b16 %v529
        %v1071 = vunpack.c.l.b16 %v530
        %v1072 = vunpack.c.h.b16 %v530
        %v1073 = vunpack.c.l.b16 %v531
        %v1074 = vunpack.c.h.b16 %v531
        %v1075 = vunpack.c.l.b16 %v532
        %v1076 = vunpack.c.h.b16 %v532
        %v1077 = vunpack.c.l.b16 %v533
        %v1078 = vunpack.c.h.b16 %v533
        %v1079 = vunpack.c.l.b16 %v534
        %v1080 = vunpack.c.h.b16 %v534
        %v1081 = vunpack.c.l.b16 %v535
        %v1082 = vunpack.c.h.b16 %v535
        %v1083 = vunpack.c.l.b16 %v536
        %v1084 = vunpack.c.h.b16 %v536
        %v1085 = vunpack.c.l.b16 %v537
        %v1086 = vunpack.c.h.b16 %v537
        %v1087 = vunpack.c.l.b16 %v538
        %v1088 = vunpack.c.h.b16 %v538
        %v1089 = vunpack.c.l.b16 %v539
        %v1090 = vunpack.c.h.b16 %v539
        %v1091 = vunpack.c.l.b16 %v540
        %v1092 = vunpack.c.h.b16 %v540
        %v1093 = vunpack.c.l.b16 %v541
        %v1094 = vunpack.c.h.b16 %v541
        %v1095 = vunpack.c.l.b16 %v542
        %v1096 = vunpack.c.h.b16 %v542
        %v1097 = vunpack.c.l.b16 %v543
        %v1098 = vunpack.c.h.b16 %v543
        %v1099 = vunpack.c.l.b16 %v544
        %v1100 = vunpack.c.h.b16 %v544
        %v1101 = vunpack.c.l.b16 %v545
        %v1102 = vunpack.c.h.b16 %v545
        %v1103 = vunpack.c.l.b16 %v546
        %v1104 = vunpack.c.h.b16 %v546
        %v1105 = vunpack.c.l.b16 %v547
        %v1106 = vunpack.c.h.b16 %v547
        %v1107 = vunpack.c.l.b16 %v548
        %v1108 = vunpack.c.h.b16 %v548
        %v1109 = vunpack.c.l.b16 %v549
        %v1110 = vunpack.c.h.b16 %v549
        %v1111 = vunpack.c.l.b16 %v550
        %v1112 = vunpack.c.h.b16 %v550
        %v1113 = vunpack.c.l.b16 %v551
        %v1114 = vunpack.c.h.b16 %v551
        %v1115 = vunpack.c.l.b16 %v552
        %v1116 = vunpack.c.h.b16 %v552
        %v1117 = vunpack.c.l.b16 %v553
        %v1118 = vunpack.c.h.b16 %v553
        %v1119 = vunpack.c.l.b16 %v554
        %v1120 = vunpack.c.h.b16 %v554
        %v1121 = vunpack.c.l.b16 %v555
        %v1122 = vunpack.c.h.b16 %v555
        %v1123 = vunpack.c.l.b16 %v556
        %v1124 = vunpack.c.h.b16 %v556
        %v1125 = vunpack.c.l.b16 %v557
        %v1126 = vunpack.c.h.b16 %v557
        %v1127 = vunpack.c.l.b16 %v558
        %v1128 = vunpack.c.h.b16 %v558
        %v1129 = vunpack.c.l.b16 %v559
        %v1130 = vunpack.c.h.b16 %v559
        %v1131 = vunpack.c.l.b16 %v560
        %v1132 = vunpack.c.h.b16 %v560
        %v1133 = vunpack.c.l.b16 %v561
        %v1134 = vunpack.c.h.b16 %v561
        %v1135 = vunpack.c.l.b16 %v562
        %v1136 = vunpack.c.h.b16 %v562
        %v1137 = vunpack.c.l.b16 %v563
        %v1138 = vunpack.c.h.b16 %v563
        %v1139 = vunpack.c.l.b16 %v564
        %v1140 = vunpack.c.h.b16 %v564
        %v1141 = vunpack.c.l.b16 %v565
        %v1142 = vunpack.c.h.b16 %v565
        %v1143 = vunpack.c.l.b16 %v566
        %v1144 = vunpack.c.h.b16 %v566
        %v1145 = vunpack.c.l.b16 %v567
        %v1146 = vunpack.c.h.b16 %v567
        %v1147 = vunpack.c.l.b16 %v568
        %v1148 = vunpack.c.h.b16 %v568
        %v1149 = vunpack.c.l.b16 %v569
        %v1150 = vunpack.c.h.b16 %v569
        %v1151 = vunpack.c.l.b16 %v570
        %v1152 = vunpack.c.h.b16 %v570
        %v1153 = vunpack.c.l.b16 %v571
        %v1154 = vunpack.c.h.b16 %v571
        %v1155 = vunpack.c.l.b16 %v572
        %v1156 = vunpack.c.h.b16 %v572
        %v1157 = vunpack.c.l.b16 %v573
        %v1158 = vunpack.c.h.b16 %v573
        %v1159 = vunpack.c.l.b16 %v574
        %v1160 = vunpack.c.h.b16 %v574
        %v1161 = vunpack.c.l.b16 %v575
        %v1162 = vunpack.c.h.b16 %v575
        %v1163 = vunpack.c.l.b16 %v576
        %v1164 = vunpack.c.h.b16 %v576
        %v1165 = vunpack.c.l.b16 %v577
        %v1166 = vunpack.c.h.b16 %v577
        %v1167 = vunpack.c.l.b16 %v578
        %v1168 = vunpack.c.h.b16 %v578
        %v1169 = vunpack.c.l.b16 %v579
        %v1170 = vunpack.c.h.b16 %v579
        %v1171 = vunpack.c.l.b16 %v580
        %v1172 = vunpack.c.h.b16 %v580
        %v1173 = vunpack.c.l.b16 %v581
        %v1174 = vunpack.c.h.b16 %v581
        %v1175 = vunpack.c.l.b16 %v582
        %v1176 = vunpack.c.h.b16 %v582
        %v1177 = vunpack.c.l.b16 %v583
        %v1178 = vunpack.c.h.b16 %v583
        %v1179 = vunpack.c.l.b16 %v584
        %v1180 = vunpack.c.h.b16 %v584
        %v1181 = vunpack.c.l.b16 %v585
        %v1182 = vunpack.c.h.b16 %v585
        %v1183 = vunpack.c.l.b16 %v586
        %v1184 = vunpack.c.h.b16 %v586
        %v1185 = vunpack.c.l.b16 %v587
        %v1186 = vunpack.c.h.b16 %v587
        %v1187 = vunpack.c.l.b16 %v588
        %v1188 = vunpack.c.h.b16 %v588
        %v1189 = vunpack.c.l.b16 %v589
        %v1190 = vunpack.c.h.b16 %v589
        %v1191 = vunpack.c.l.b16 %v590
        %v1192 = vunpack.c.h.b16 %v590
        %v1193 = vunpack.c.l.b16 %v591
        %v1194 = vunpack.c.h.b16 %v591
        %v1195 = vunpack.c.l.b16 %v592
        %v1196 = vunpack.c.h.b16 %v592
        %v1197 = vunpack.c.l.b16 %v593
        %v1198 = vunpack.c.h.b16 %v593
        %v1199 = vunpack.c.l.b16 %v594
        %v1200 = vunpack.c.h.b16 %v594
        %v1201 = vunpack.c.l.b16 %v595
        %v1202 = vunpack.c.h.b16 %v595
        %v1203 = vunpack.c.l.b16 %v596
        %v1204 = vunpack.c.h.b16 %v596
        %v1205 = vunpack.c.l.b16 %v597
        %v1206 = vunpack.c.h.b16 %v597
        %v1207 = vunpack.c.l.b16 %v598
        %v1208 = vunpack.c.h.b16 %v598
        %v1209 = vunpack.c.l.b16 %v599
        %v1210 = vunpack.c.h.b16 %v599
        %v1211 = vunpack.c.l.b16 %v600
        %v1212 = vunpack.c.h.b16 %v600
        %v1213 = vunpack.c.l.b16 %v601
        %v1214 = vunpack.c.h.b16 %v601
        %v1215 = vunpack.c.l.b16 %v602
        %v1216 = vunpack.c.h.b16 %v602
        %v1217 = vunpack.c.l.b16 %v603
        %v1218 = vunpack.c.h.b16 %v603
        %v1219 = vunpack.c.l.b16 %v604
        %v1220 = vunpack.c.h.b16 %v604
        %v1221 = vunpack.c.l.b16 %v605
        %v1222 = vunpack.c.h.b16 %v605
        %v1223 = vunpack.c.l.b16 %v606
        %v1224 = vunpack.c.h.b16 %v606
        %v1225 = vunpack.c.l.b16 %v607
        %v1226 = vunpack.c.h.b16 %v607
        %v1227 = vunpack.c.l.b16 %v608
        %v1228 = vunpack.c.h.b16 %v608
        %v1229 = vunpack.c.l.b16 %v609
        %v1230 = vunpack.c.h.b16 %v609
        %v1231 = vunpack.c.l.b16 %v610
        %v1232 = vunpack.c.h.b16 %v610
        %v1233 = vunpack.c.l.b16 %v611
        %v1234 = vunpack.c.h.b16 %v611
        %v1235 = vunpack.c.l.b16 %v612
        %v1236 = vunpack.c.h.b16 %v612
        %v1237 = vunpack.c.l.b16 %v613
        %v1238 = vunpack.c.h.b16 %v613
        %v1239 = vunpack.c.l.b16 %v614
        %v1240 = vunpack.c.h.b16 %v614
        %v1241 = vunpack.c.l.b16 %v615
        %v1242 = vunpack.c.h.b16 %v615
        %v1243 = vunpack.c.l.b16 %v616
        %v1244 = vunpack.c.h.b16 %v616
        %v1245 = vunpack.c.l.b16 %v617
        %v1246 = vunpack.c.h.b16 %v617
        %v1247 = vunpack.c.l.b16 %v618
        %v1248 = vunpack.c.h.b16 %v618
        %v1249 = vunpack.c.l.b16 %v619
        %v1250 = vunpack.c.h.b16 %v619
        %v1251 = vunpack.c.l.b16 %v620
        %v1252 = vunpack.c.h.b16 %v620
        %v1253 = vunpack.c.l.b16 %v621
        %v1254 = vunpack.c.h.b16 %v621
        %v1255 = vunpack.c.l.b16 %v622
        %v1256 = vunpack.c.h.b16 %v622
        %v1257 = vpack.c.b16 %v869, %v865
        %v1258 = vpack.c.b16 %v870, %v866
        %v1259 = vpack.c.b16 %v871, %v867
        %v1260 = vpack.c.b16 %v872, %v868
        %v1261 = vpack.c.b16 %v877, %v873
        %v1262 = vpack.c.b16 %v878, %v874
        %v1263 = vpack.c.b16 %v879, %v875
        %v1264 = vpack.c.b16 %v880, %v876
        %v1265 = vpack.c.b16 %v885, %v881
        %v1266 = vpack.c.b16 %v886, %v882
        %v1267 = vpack.c.b16 %v887, %v883
        %v1268 = vpack.c.b16 %v888, %v884
        %v1269 = vpack.c.b16 %v893, %v889
        %v1270 = vpack.c.b16 %v894, %v890
        %v1271 = vpack.c.b16 %v895, %v891
        %v1272 = vpack.c.b16 %v896, %v892
        %v1273 = vpack.c.b16 %v901, %v897
        %v1274 = vpack.c.b16 %v902, %v898
        %v1275 = vpack.c.b16 %v903, %v899
        %v1276 = vpack.c.b16 %v904, %v900
        %v1277 = vpack.c.b16 %v909, %v905
        %v1278 = vpack.c.b16 %v910, %v906
        %v1279 = vpack.c.b16 %v911, %v907
        %v1280 = vpack.c.b16 %v912, %v908
        %v1281 = vpack.c.b16 %v917, %v913
        %v1282 = vpack.c.b16 %v918, %v914
        %v1283 = vpack.c.b16 %v919, %v915
        %v1284 = vpack.c.b16 %v920, %v916
        %v1285 = vpack.c.b16 %v925, %v921
        %v1286 = vpack.c.b16 %v926, %v922
        %v1287 = vpack.c.b16 %v927, %v923
        %v1288 = vpack.c.b16 %v928, %v924
        %v1289 = vpack.c.b16 %v933, %v929
        %v1290 = vpack.c.b16 %v934, %v930
        %v1291 = vpack.c.b16 %v935, %v931
        %v1292 = vpack.c.b16 %v936, %v932
        %v1293 = vpack.c.b16 %v941, %v937
        %v1294 = vpack.c.b16 %v942, %v938
        %v1295 = vpack.c.b16 %v943, %v939
        %v1296 = vpack.c.b16 %v944, %v940
        %v1297 = vpack.c.b16 %v949, %v945
        %v1298 = vpack.c.b16 %v950, %v946
        %v1299 = vpack.c.b16 %v951, %v947
        %v1300 = vpack.c.b16 %v952, %v948
        %v1301 = vpack.c.b16 %v957, %v953
        %v1302 = vpack.c.b16 %v958, %v954
        %v1303 = vpack.c.b16 %v959, %v955
        %v1304 = vpack.c.b16 %v960, %v956
        %v1305 = vpack.c.b16 %v965, %v961
        %v1306 = vpack.c.b16 %v966, %v962
        %v1307 = vpack.c.b16 %v967, %v963
        %v1308 = vpack.c.b16 %v968, %v964
        %v1309 = vpack.c.b16 %v973, %v969
        %v1310 = vpack.c.b16 %v974, %v970
        %v1311 = vpack.c.b16 %v975, %v971
        %v1312 = vpack.c.b16 %v976, %v972
        %v1313 = vpack.c.b16 %v981, %v977
        %v1314 = vpack.c.b16 %v982, %v978
        %v1315 = vpack.c.b16 %v983, %v979
        %v1316 = vpack.c.b16 %v984, %v980
        %v1317 = vpack.c.b16 %v989, %v985
        %v1318 = vpack.c.b16 %v990, %v986
        %v1319 = vpack.c.b16 %v991, %v987
        %v1320 = vpack.c.b16 %v992, %v988
        %v1321 = vpack.c.b16 %v997, %v993
        %v1322 = vpack.c.b16 %v998, %v994
        %v1323 = vpack.c.b16 %v999, %v995
        %v1324 = vpack.c.b16 %v1000, %v996
        %v1325 = vpack.c.b16 %v1005, %v1001
        %v1326 = vpack.c.b16 %v1006, %v1002
        %v1327 = vpack.c.b16 %v1007, %v1003
        %v1328 = vpack.c.b16 %v1008, %v1004
        %v1329 = vpack.c.b16 %v1013, %v1009
        %v1330 = vpack.c.b16 %v1014, %v1010
        %v1331 = vpack.c.b16 %v1015, %v1011
        %v1332 = vpack.c.b16 %v1016, %v1012
        %v1333 = vpack.c.b16 %v1021, %v1017
        %v1334 = vpack.c.b16 %v1022, %v1018
        %v1335 = vpack.c.b16 %v1023, %v1019
        %v1336 = vpack.c.b16 %v1024, %v1020
        %v1337 = vpack.c.b16 %v1029, %v1025
        %v1338 = vpack.c.b16 %v1030, %v1026
        %v1339 = vpack.c.b16 %v1031, %v1027
        %v1340 = vpack.c.b16 %v1032, %v1028
        %v1341 = vpack.c.b16 %v1037, %v1033
        %v1342 = vpack.c.b16 %v1038, %v1034
        %v1343 = vpack.c.b16 %v1039, %v1035
        %v1344 = vpack.c.b16 %v1040, %v1036
        %v1345 = vpack.c.b16 %v1045, %v1041
        %v1346 = vpack.c.b16 %v1046, %v1042
        %v1347 = vpack.c.b16 %v1047, %v1043
        %v1348 = vpack.c.b16 %v1048, %v1044
        %v1349 = vpack.c.b16 %v1053, %v1049
        %v1350 = vpack.c.b16 %v1054, %v1050
        %v1351 = vpack.c.b16 %v1055, %v1051
        %v1352 = vpack.c.b16 %v1056, %v1052
        %v1353 = vpack.c.b16 %v1061, %v1057
        %v1354 = vpack.c.b16 %v1062, %v1058
        %v1355 = vpack.c.b16 %v1063, %v1059
        %v1356 = vpack.c.b16 %v1064, %v1060
        %v1357 = vpack.c.b16 %v1069, %v1065
        %v1358 = vpack.c.b16 %v1070, %v1066
        %v1359 = vpack.c.b16 %v1071, %v1067
        %v1360 = vpack.c.b16 %v1072, %v1068
        %v1361 = vpack.c.b16 %v1077, %v1073
        %v1362 = vpack.c.b16 %v1078, %v1074
        %v1363 = vpack.c.b16 %v1079, %v1075
        %v1364 = vpack.c.b16 %v1080, %v1076
        %v1365 = vpack.c.b16 %v1085, %v1081
        %v1366 = vpack.c.b16 %v1086, %v1082
        %v1367 = vpack.c.b16 %v1087, %v1083
        %v1368 = vpack.c.b16 %v1088, %v1084
        %v1369 = vpack.c.b16 %v1093, %v1089
        %v1370 = vpack.c.b16 %v1094, %v1090
        %v1371 = vpack.c.b16 %v1095, %v1091
        %v1372 = vpack.c.b16 %v1096, %v1092
        %v1373 = vpack.c.b16 %v1101, %v1097
        %v1374 = vpack.c.b16 %v1102, %v1098
        %v1375 = vpack.c.b16 %v1103, %v1099
        %v1376 = vpack.c.b16 %v1104, %v1100
        %v1377 = vpack.c.b16 %v1109, %v1105
        %v1378 = vpack.c.b16 %v1110, %v1106
        %v1379 = vpack.c.b16 %v1111, %v1107
        %v1380 = vpack.c.b16 %v1112, %v1108
        %v1381 = vpack.c.b16 %v1117, %v1113
        %v1382 = vpack.c.b16 %v1118, %v1114
        %v1383 = vpack.c.b16 %v1119, %v1115
        %v1384 = vpack.c.b16 %v1120, %v1116
        %v1385 = vpack.c.b16 %v1125, %v1121
        %v1386 = vpack.c.b16 %v1126, %v1122
        %v1387 = vpack.c.b16 %v1127, %v1123
        %v1388 = vpack.c.b16 %v1128, %v1124
        %v1389 = vpack.c.b16 %v1133, %v1129
        %v1390 = vpack.c.b16 %v1134, %v1130
        %v1391 = vpack.c.b16 %v1135, %v1131
        %v1392 = vpack.c.b16 %v1136, %v1132
        %v1393 = vpack.c.b16 %v1141, %v1137
        %v1394 = vpack.c.b16 %v1142, %v1138
        %v1395 = vpack.c.b16 %v1143, %v1139
        %v1396 = vpack.c.b16 %v1144, %v1140
        %v1397 = vpack.c.b16 %v1149, %v1145
        %v1398 = vpack.c.b16 %v1150, %v1146
        %v1399 = vpack.c.b16 %v1151, %v1147
        %v1400 = vpack.c.b16 %v1152, %v1148
        %v1401 = vpack.c.b16 %v1157, %v1153
        %v1402 = vpack.c.b16 %v1158, %v1154
        %v1403 = vpack.c.b16 %v1159, %v1155
        %v1404 = vpack.c.b16 %v1160, %v1156
        %v1405 = vpack.c.b16 %v1165, %v1161
        %v1406 = vpack.c.b16 %v1166, %v1162
        %v1407 = vpack.c.b16 %v1167, %v1163
        %v1408 = vpack.c.b16 %v1168, %v1164
        %v1409 = vpack.c.b16 %v1173, %v1169
        %v1410 = vpack.c.b16 %v1174, %v1170
        %v1411 = vpack.c.b16 %v1175, %v1171
        %v1412 = vpack.c.b16 %v1176, %v1172
        %v1413 = vpack.c.b16 %v1181, %v1177
        %v1414 = vpack.c.b16 %v1182, %v1178
        %v1415 = vpack.c.b16 %v1183, %v1179
        %v1416 = vpack.c.b16 %v1184, %v1180
        %v1417 = vpack.c.b16 %v1189, %v1185
        %v1418 = vpack.c.b16 %v1190, %v1186
        %v1419 = vpack.c.b16 %v1191, %v1187
        %v1420 = vpack.c.b16 %v1192, %v1188
        %v1421 = vpack.c.b16 %v1197, %v1193
        %v1422 = vpack.c.b16 %v1198, %v1194
        %v1423 = vpack.c.b16 %v1199, %v1195
        %v1424 = vpack.c.b16 %v1200, %v1196
        %v1425 = vpack.c.b16 %v1205, %v1201
        %v1426 = vpack.c.b16 %v1206, %v1202
        %v1427 = vpack.c.b16 %v1207, %v1203
        %v1428 = vpack.c.b16 %v1208, %v1204
        %v1429 = vpack.c.b16 %v1213, %v1209
        %v1430 = vpack.c.b16 %v1214, %v1210
        %v1431 = vpack.c.b16 %v1215, %v1211
        %v1432 = vpack.c.b16 %v1216, %v1212
        %v1433 = vpack.c.b16 %v1221, %v1217
        %v1434 = vpack.c.b16 %v1222, %v1218
        %v1435 = vpack.c.b16 %v1223, %v1219
        %v1436 = vpack.c.b16 %v1224, %v1220
        %v1437 = vpack.c.b16 %v1229, %v1225
        %v1438 = vpack.c.b16 %v1230, %v1226
        %v1439 = vpack.c.b16 %v1231, %v1227
        %v1440 = vpack.c.b16 %v1232, %v1228
        %v1441 = vpack.c.b16 %v1237, %v1233
        %v1442 = vpack.c.b16 %v1238, %v1234
        %v1443 = vpack.c.b16 %v1239, %v1235
        %v1444 = vpack.c.b16 %v1240, %v1236
        %v1445 = vpack.c.b16 %v1245, %v1241
        %v1446 = vpack.c.b16 %v1246, %v1242
        %v1447 = vpack.c.b16 %v1247, %v1243
        %v1448 = vpack.c.b16 %v1248, %v1244
        %v1449 = vpack.c.b16 %v1253, %v1249
        %v1450 = vpack.c.b16 %v1254, %v1250
        %v1451 = vpack.c.b16 %v1255, %v1251
        %v1452 = vpack.c.b16 %v1256, %v1252
        %vm1649 = vcmask 130048
        %v1651 = vsel %vm1649, %v662, 0
        %1653 = vmatprep.subr.bf16.mxu0 %v1286
        %1654 = vmatpush1.bf16.msra.mxu0 %v1285
        %1655 = vmatprep.subr.bf16.mxu0 %v1282
        %1656 = vmatpush1.bf16.msra.mxu0 %v1281
        %1657 = vmatprep.subr.bf16.mxu0 %v1278
        %1658 = vmatpush1.bf16.msra.mxu0 %v1277
        %1659 = vmatprep.subr.bf16.mxu0 %v1274
        %1660 = vmatpush1.bf16.msra.mxu0 %v1273
        %1661 = vmatprep.subr.bf16.mxu0 %v1270
        %1662 = vmatpush1.bf16.msra.mxu0 %v1269
        %1663 = vmatprep.subr.bf16.mxu0 %v1266
        %1664 = vmatpush1.bf16.msra.mxu0 %v1265
        %1665 = vmatprep.subr.bf16.mxu0 %v1262
        %1666 = vmatpush1.bf16.msra.mxu0 %v1261
        %1667 = vmatprep.subr.bf16.mxu0 %v1258
        %1668 = vmatpush1.bf16.msra.mxu0 %v1257
        %1669 = vmatprep.subr.bf16.mxu0 %v1318
        %1670 = vmatpush2.bf16.msra.mxu0 %v1317
        %1671 = vmatprep.subr.bf16.mxu0 %v1314
        %1672 = vmatpush2.bf16.msra.mxu0 %v1313
        %1673 = vmatprep.subr.bf16.mxu0 %v1310
        %1674 = vmatpush2.bf16.msra.mxu0 %v1309
        %1675 = vmatprep.subr.bf16.mxu0 %v1306
        %1676 = vmatpush2.bf16.msra.mxu0 %v1305
        %1677 = vmatprep.subr.bf16.mxu0 %v1302
        %1678 = vmatpush2.bf16.msra.mxu0 %v1301
        %1679 = vmatprep.subr.bf16.mxu0 %v1298
        %1680 = vmatpush2.bf16.msra.mxu0 %v1297
        %1681 = vmatprep.subr.bf16.mxu0 %v1294
        %1682 = vmatpush2.bf16.msra.mxu0 %v1293
        %1683 = vmatprep.subr.bf16.mxu0 %v1290
        %1684 = vmatpush2.bf16.msra.mxu0 %v1289
        %1685 = vmatprep.mubr.bf16.mxu0 %v657
        %1686 = vmatmul.mubr.bf16.gmra.mxu0 %v656
        %v1687 = vpop.f32.mrf.mxu0
        %v1688 = vadd.f32 %v628, %v1687
        %v1689 = vpop.f32.mrf.mxu0
        %v1690 = vadd.f32 %v632, %v1689
        %v1691 = vpop.f32.mrf.mxu0
        %v1692 = vpop.f32.mrf.mxu0
        %1693 = vdwg.mxu0
        %1694 = vmatprep.subr.bf16.mxu0 %v1350
        %1695 = vmatpush1.bf16.msra.mxu0 %v1349
        %1696 = vmatprep.subr.bf16.mxu0 %v1346
        %1697 = vmatpush1.bf16.msra.mxu0 %v1345
        %1698 = vmatprep.subr.bf16.mxu0 %v1342
        %1699 = vmatpush1.bf16.msra.mxu0 %v1341
        %1700 = vmatprep.subr.bf16.mxu0 %v1338
        %1701 = vmatpush1.bf16.msra.mxu0 %v1337
        %1702 = vmatprep.subr.bf16.mxu0 %v1334
        %1703 = vmatpush1.bf16.msra.mxu0 %v1333
        %1704 = vmatprep.subr.bf16.mxu0 %v1330
        %1705 = vmatpush1.bf16.msra.mxu0 %v1329
        %1706 = vmatprep.subr.bf16.mxu0 %v1326
        %1707 = vmatpush1.bf16.msra.mxu0 %v1325
        %1708 = vmatprep.subr.bf16.mxu0 %v1322
        %1709 = vmatpush1.bf16.msra.mxu0 %v1321
        %1710 = vmatprep.subr.bf16.mxu0 %v1382
        %1711 = vmatpush2.bf16.msra.mxu0 %v1381
        %1712 = vmatprep.subr.bf16.mxu0 %v1378
        %1713 = vmatpush2.bf16.msra.mxu0 %v1377
        %1714 = vmatprep.subr.bf16.mxu0 %v1374
        %1715 = vmatpush2.bf16.msra.mxu0 %v1373
        %1716 = vmatprep.subr.bf16.mxu0 %v1370
        %1717 = vmatpush2.bf16.msra.mxu0 %v1369
        %1718 = vmatprep.subr.bf16.mxu0 %v1366
        %1719 = vmatpush2.bf16.msra.mxu0 %v1365
        %1720 = vmatprep.subr.bf16.mxu0 %v1362
        %1721 = vmatpush2.bf16.msra.mxu0 %v1361
        %1722 = vmatprep.subr.bf16.mxu0 %v1358
        %1723 = vmatpush2.bf16.msra.mxu0 %v1357
        %1724 = vmatprep.subr.bf16.mxu0 %v1354
        %1725 = vmatpush2.bf16.msra.mxu0 %v1353
        %1726 = vmatprep.mubr.bf16.mxu0 %v659
        %1727 = vmatmul.mubr.bf16.gmra.mxu0 %v658
        %v1728 = vpop.f32.mrf.mxu0
        %v1729 = vadd.f32 %v1688, %v1728
        %v1730 = vpop.f32.mrf.mxu0
        %v1731 = vadd.f32 %v1690, %v1730
        %v1732 = vpop.f32.mrf.mxu0
        %v1733 = vpop.f32.mrf.mxu0
        %1734 = vdwg.mxu0
        %1735 = vmatprep.subr.bf16.mxu0 %v1414
        %1736 = vmatpush1.bf16.msra.mxu0 %v1413
        %1737 = vmatprep.subr.bf16.mxu0 %v1410
        %1738 = vmatpush1.bf16.msra.mxu0 %v1409
        %1739 = vmatprep.subr.bf16.mxu0 %v1406
        %1740 = vmatpush1.bf16.msra.mxu0 %v1405
        %1741 = vmatprep.subr.bf16.mxu0 %v1402
        %1742 = vmatpush1.bf16.msra.mxu0 %v1401
        %1743 = vmatprep.subr.bf16.mxu0 %v1398
        %1744 = vmatpush1.bf16.msra.mxu0 %v1397
        %1745 = vmatprep.subr.bf16.mxu0 %v1394
        %1746 = vmatpush1.bf16.msra.mxu0 %v1393
        %1747 = vmatprep.subr.bf16.mxu0 %v1390
        %1748 = vmatpush1.bf16.msra.mxu0 %v1389
        %1749 = vmatprep.subr.bf16.mxu0 %v1386
        %1750 = vmatpush1.bf16.msra.mxu0 %v1385
        %1751 = vmatprep.subr.bf16.mxu0 %v1446
        %1752 = vmatpush2.bf16.msra.mxu0 %v1445
        %1753 = vmatprep.subr.bf16.mxu0 %v1442
        %1754 = vmatpush2.bf16.msra.mxu0 %v1441
        %1755 = vmatprep.subr.bf16.mxu0 %v1438
        %1756 = vmatpush2.bf16.msra.mxu0 %v1437
        %1757 = vmatprep.subr.bf16.mxu0 %v1434
        %1758 = vmatpush2.bf16.msra.mxu0 %v1433
        %1759 = vmatprep.subr.bf16.mxu0 %v1430
        %1760 = vmatpush2.bf16.msra.mxu0 %v1429
        %1761 = vmatprep.subr.bf16.mxu0 %v1426
        %1762 = vmatpush2.bf16.msra.mxu0 %v1425
        %1763 = vmatprep.subr.bf16.mxu0 %v1422
        %1764 = vmatpush2.bf16.msra.mxu0 %v1421
        %1765 = vmatprep.subr.bf16.mxu0 %v1418
        %1766 = vmatpush2.bf16.msra.mxu0 %v1417
        %1767 = vmatprep.mubr.bf16.mxu0 %v661
        %1768 = vmatmul.mubr.bf16.gmra.mxu0 %v660
        %v1769 = vpop.f32.mrf.mxu0
        %v1770 = vadd.f32 %v1729, %v1769
        %v1771 = vpop.f32.mrf.mxu0
        %v1772 = vadd.f32 %v1731, %v1771
        %v1773 = vpop.f32.mrf.mxu0
        %v1774 = vpop.f32.mrf.mxu0
        %1775 = vdwg.mxu0
        %1776 = vmatprep.subr.bf16.mxu0 0
        %1777 = vmatpush1.bf16.msra.mxu0 0
        %1778 = vmatprep.subr.bf16.mxu0 0
        %1779 = vmatpush1.bf16.msra.mxu0 0
        %1780 = vmatprep.subr.bf16.mxu0 0
        %1781 = vmatpush1.bf16.msra.mxu0 0
        %1782 = vmatprep.subr.bf16.mxu0 0
        %1783 = vmatpush1.bf16.msra.mxu0 0
        %1784 = vmatprep.subr.bf16.mxu0 0
        %1785 = vmatpush1.bf16.msra.mxu0 0
        %1786 = vmatprep.subr.bf16.mxu0 0
        %1787 = vmatpush1.bf16.msra.mxu0 0
        %1788 = vmatprep.subr.bf16.mxu0 0
        %1789 = vmatpush1.bf16.msra.mxu0 0
        %1790 = vmatprep.subr.bf16.mxu0 %v1450
        %1791 = vmatpush1.bf16.msra.mxu0 %v1449
        %1792 = vmatprep.subr.bf16.mxu0 0
        %1793 = vmatpush2.bf16.msra.mxu0 0
        %1794 = vmatprep.subr.bf16.mxu0 0
        %1795 = vmatpush2.bf16.msra.mxu0 0
        %1796 = vmatprep.subr.bf16.mxu0 0
        %1797 = vmatpush2.bf16.msra.mxu0 0
        %1798 = vmatprep.subr.bf16.mxu0 0
        %1799 = vmatpush2.bf16.msra.mxu0 0
        %1800 = vmatprep.subr.bf16.mxu0 0
        %1801 = vmatpush2.bf16.msra.mxu0 0
        %1802 = vmatprep.subr.bf16.mxu0 0
        %1803 = vmatpush2.bf16.msra.mxu0 0
        %1804 = vmatprep.subr.bf16.mxu0 0
        %1805 = vmatpush2.bf16.msra.mxu0 0
        %1806 = vmatprep.subr.bf16.mxu0 0
        %1807 = vmatpush2.bf16.msra.mxu0 0
        %1808 = vmatprep.mubr.bf16.mxu0 0
        %1809 = vmatmul.mubr.bf16.gmra.mxu0 %v1651
        %v1810 = vpop.f32.mrf.mxu0
        %v1811 = vadd.f32 %v1770, %v1810
        %v1812 = vpop.f32.mrf.mxu0
        %v1813 = vadd.f32 %v1772, %v1812
        %v1814 = vpop.f32.mrf.mxu0
        %v1815 = vpop.f32.mrf.mxu0
        %1816 = vdwg.mxu0
        %1817 = vmatprep.subr.bf16.mxu0 %v1288
        %1818 = vmatpush1.bf16.msra.mxu0 %v1287
        %1819 = vmatprep.subr.bf16.mxu0 %v1284
        %1820 = vmatpush1.bf16.msra.mxu0 %v1283
        %1821 = vmatprep.subr.bf16.mxu0 %v1280
        %1822 = vmatpush1.bf16.msra.mxu0 %v1279
        %1823 = vmatprep.subr.bf16.mxu0 %v1276
        %1824 = vmatpush1.bf16.msra.mxu0 %v1275
        %1825 = vmatprep.subr.bf16.mxu0 %v1272
        %1826 = vmatpush1.bf16.msra.mxu0 %v1271
        %1827 = vmatprep.subr.bf16.mxu0 %v1268
        %1828 = vmatpush1.bf16.msra.mxu0 %v1267
        %1829 = vmatprep.subr.bf16.mxu0 %v1264
        %1830 = vmatpush1.bf16.msra.mxu0 %v1263
        %1831 = vmatprep.subr.bf16.mxu0 %v1260
        %1832 = vmatpush1.bf16.msra.mxu0 %v1259
        %1833 = vmatprep.subr.bf16.mxu0 %v1320
        %1834 = vmatpush2.bf16.msra.mxu0 %v1319
        %1835 = vmatprep.subr.bf16.mxu0 %v1316
        %1836 = vmatpush2.bf16.msra.mxu0 %v1315
        %1837 = vmatprep.subr.bf16.mxu0 %v1312
        %1838 = vmatpush2.bf16.msra.mxu0 %v1311
        %1839 = vmatprep.subr.bf16.mxu0 %v1308
        %1840 = vmatpush2.bf16.msra.mxu0 %v1307
        %1841 = vmatprep.subr.bf16.mxu0 %v1304
        %1842 = vmatpush2.bf16.msra.mxu0 %v1303
        %1843 = vmatprep.subr.bf16.mxu0 %v1300
        %1844 = vmatpush2.bf16.msra.mxu0 %v1299
        %1845 = vmatprep.subr.bf16.mxu0 %v1296
        %1846 = vmatpush2.bf16.msra.mxu0 %v1295
        %1847 = vmatprep.subr.bf16.mxu0 %v1292
        %1848 = vmatpush2.bf16.msra.mxu0 %v1291
        %1849 = vmatprep.mubr.bf16.mxu0 %v657
        %1850 = vmatmul.mubr.bf16.gmra.mxu0 %v656
        %v1851 = vpop.f32.mrf.mxu0
        %v1852 = vadd.f32 %v636, %v1851
        %v1853 = vpop.f32.mrf.mxu0
        %v1854 = vadd.f32 %v640, %v1853
        %v1855 = vpop.f32.mrf.mxu0
        %v1856 = vpop.f32.mrf.mxu0
        %1857 = vdwg.mxu0
        %1858 = vmatprep.subr.bf16.mxu0 %v1352
        %1859 = vmatpush1.bf16.msra.mxu0 %v1351
        %1860 = vmatprep.subr.bf16.mxu0 %v1348
        %1861 = vmatpush1.bf16.msra.mxu0 %v1347
        %1862 = vmatprep.subr.bf16.mxu0 %v1344
        %1863 = vmatpush1.bf16.msra.mxu0 %v1343
        %1864 = vmatprep.subr.bf16.mxu0 %v1340
        %1865 = vmatpush1.bf16.msra.mxu0 %v1339
        %1866 = vmatprep.subr.bf16.mxu0 %v1336
        %1867 = vmatpush1.bf16.msra.mxu0 %v1335
        %1868 = vmatprep.subr.bf16.mxu0 %v1332
        %1869 = vmatpush1.bf16.msra.mxu0 %v1331
        %1870 = vmatprep.subr.bf16.mxu0 %v1328
        %1871 = vmatpush1.bf16.msra.mxu0 %v1327
        %1872 = vmatprep.subr.bf16.mxu0 %v1324
        %1873 = vmatpush1.bf16.msra.mxu0 %v1323
        %1874 = vmatprep.subr.bf16.mxu0 %v1384
        %1875 = vmatpush2.bf16.msra.mxu0 %v1383
        %1876 = vmatprep.subr.bf16.mxu0 %v1380
        %1877 = vmatpush2.bf16.msra.mxu0 %v1379
        %1878 = vmatprep.subr.bf16.mxu0 %v1376
        %1879 = vmatpush2.bf16.msra.mxu0 %v1375
        %1880 = vmatprep.subr.bf16.mxu0 %v1372
        %1881 = vmatpush2.bf16.msra.mxu0 %v1371
        %1882 = vmatprep.subr.bf16.mxu0 %v1368
        %1883 = vmatpush2.bf16.msra.mxu0 %v1367
        %1884 = vmatprep.subr.bf16.mxu0 %v1364
        %1885 = vmatpush2.bf16.msra.mxu0 %v1363
        %1886 = vmatprep.subr.bf16.mxu0 %v1360
        %1887 = vmatpush2.bf16.msra.mxu0 %v1359
        %1888 = vmatprep.subr.bf16.mxu0 %v1356
        %1889 = vmatpush2.bf16.msra.mxu0 %v1355
        %1890 = vmatprep.mubr.bf16.mxu0 %v659
        %1891 = vmatmul.mubr.bf16.gmra.mxu0 %v658
        %v1892 = vpop.f32.mrf.mxu0
        %v1893 = vadd.f32 %v1852, %v1892
        %v1894 = vpop.f32.mrf.mxu0
        %v1895 = vadd.f32 %v1854, %v1894
        %v1896 = vpop.f32.mrf.mxu0
        %v1897 = vpop.f32.mrf.mxu0
        %1898 = vdwg.mxu0
        %1899 = vmatprep.subr.bf16.mxu0 %v1416
        %1900 = vmatpush1.bf16.msra.mxu0 %v1415
        %1901 = vmatprep.subr.bf16.mxu0 %v1412
        %1902 = vmatpush1.bf16.msra.mxu0 %v1411
        %1903 = vmatprep.subr.bf16.mxu0 %v1408
        %1904 = vmatpush1.bf16.msra.mxu0 %v1407
        %1905 = vmatprep.subr.bf16.mxu0 %v1404
        %1906 = vmatpush1.bf16.msra.mxu0 %v1403
        %1907 = vmatprep.subr.bf16.mxu0 %v1400
        %1908 = vmatpush1.bf16.msra.mxu0 %v1399
        %1909 = vmatprep.subr.bf16.mxu0 %v1396
        %1910 = vmatpush1.bf16.msra.mxu0 %v1395
        %1911 = vmatprep.subr.bf16.mxu0 %v1392
        %1912 = vmatpush1.bf16.msra.mxu0 %v1391
        %1913 = vmatprep.subr.bf16.mxu0 %v1388
        %1914 = vmatpush1.bf16.msra.mxu0 %v1387
        %1915 = vmatprep.subr.bf16.mxu0 %v1448
        %1916 = vmatpush2.bf16.msra.mxu0 %v1447
        %1917 = vmatprep.subr.bf16.mxu0 %v1444
        %1918 = vmatpush2.bf16.msra.mxu0 %v1443
        %1919 = vmatprep.subr.bf16.mxu0 %v1440
        %1920 = vmatpush2.bf16.msra.mxu0 %v1439
        %1921 = vmatprep.subr.bf16.mxu0 %v1436
        %1922 = vmatpush2.bf16.msra.mxu0 %v1435
        %1923 = vmatprep.subr.bf16.mxu0 %v1432
        %1924 = vmatpush2.bf16.msra.mxu0 %v1431
        %1925 = vmatprep.subr.bf16.mxu0 %v1428
        %1926 = vmatpush2.bf16.msra.mxu0 %v1427
        %1927 = vmatprep.subr.bf16.mxu0 %v1424
        %1928 = vmatpush2.bf16.msra.mxu0 %v1423
        %1929 = vmatprep.subr.bf16.mxu0 %v1420
        %1930 = vmatpush2.bf16.msra.mxu0 %v1419
        %1931 = vmatprep.mubr.bf16.mxu0 %v661
        %1932 = vmatmul.mubr.bf16.gmra.mxu0 %v660
        %v1933 = vpop.f32.mrf.mxu0
        %v1934 = vadd.f32 %v1893, %v1933
        %v1935 = vpop.f32.mrf.mxu0
        %v1936 = vadd.f32 %v1895, %v1935
        %v1937 = vpop.f32.mrf.mxu0
        %v1938 = vpop.f32.mrf.mxu0
        %1939 = vdwg.mxu0
        %1940 = vmatprep.subr.bf16.mxu0 0
        %1941 = vmatpush1.bf16.msra.mxu0 0
        %1942 = vmatprep.subr.bf16.mxu0 0
        %1943 = vmatpush1.bf16.msra.mxu0 0
        %1944 = vmatprep.subr.bf16.mxu0 0
        %1945 = vmatpush1.bf16.msra.mxu0 0
        %1946 = vmatprep.subr.bf16.mxu0 0
        %1947 = vmatpush1.bf16.msra.mxu0 0
        %1948 = vmatprep.subr.bf16.mxu0 0
        %1949 = vmatpush1.bf16.msra.mxu0 0
        %1950 = vmatprep.subr.bf16.mxu0 0
        %1951 = vmatpush1.bf16.msra.mxu0 0
        %1952 = vmatprep.subr.bf16.mxu0 0
        %1953 = vmatpush1.bf16.msra.mxu0 0
        %1954 = vmatprep.subr.bf16.mxu0 %v1452
        %1955 = vmatpush1.bf16.msra.mxu0 %v1451
        %1956 = vmatprep.subr.bf16.mxu0 0
        %1957 = vmatpush2.bf16.msra.mxu0 0
        %1958 = vmatprep.subr.bf16.mxu0 0
        %1959 = vmatpush2.bf16.msra.mxu0 0
        %1960 = vmatprep.subr.bf16.mxu0 0
        %1961 = vmatpush2.bf16.msra.mxu0 0
        %1962 = vmatprep.subr.bf16.mxu0 0
        %1963 = vmatpush2.bf16.msra.mxu0 0
        %1964 = vmatprep.subr.bf16.mxu0 0
        %1965 = vmatpush2.bf16.msra.mxu0 0
        %1966 = vmatprep.subr.bf16.mxu0 0
        %1967 = vmatpush2.bf16.msra.mxu0 0
        %1968 = vmatprep.subr.bf16.mxu0 0
        %1969 = vmatpush2.bf16.msra.mxu0 0
        %1970 = vmatprep.subr.bf16.mxu0 0
        %1971 = vmatpush2.bf16.msra.mxu0 0
        %1972 = vmatprep.mubr.bf16.mxu0 0
        %1973 = vmatmul.mubr.bf16.gmra.mxu0 %v1651
        %v1974 = vpop.f32.mrf.mxu0
        %v1975 = vadd.f32 %v1934, %v1974
        %v1976 = vpop.f32.mrf.mxu0
        %v1977 = vadd.f32 %v1936, %v1976
        %v1978 = vpop.f32.mrf.mxu0
        %v1979 = vpop.f32.mrf.mxu0
        %1980 = vdwg.mxu0
        %v1981 = vmax.f32 %v1811, 0.0
        %v1982 = vmax.f32 %v1813, 0.0
        %v1983 = vmax.f32 %v1975, 0.0
        %v1984 = vmax.f32 %v1977, 0.0
        %v1985 = vld [vmem:[#allocation2] sm:$0xff]
        %v1986 = vpack.c.bf16 %v1981, %v1981
        %v1987 = vpack.c.bf16 %v1982, %v1982
        %v1988 = vpack.c.bf16 %v1983, %v1983
        %v1989 = vpack.c.bf16 %v1984, %v1984
        %v1990 = vld [vmem:[%s410] sm:$0xf]
        %v1991 = vld [vmem:[%s410 + $0x4] sm:$0xf]
        %v1992 = vld [vmem:[%s410 + $0x8] sm:$0xf]
        %v1993 = vld [vmem:[%s410 + $0xc] sm:$0xf]
        %v1994 = vld [vmem:[%s410 + $0x10] sm:$0xf]
        %v1995 = vld [vmem:[%s410 + $0x14] sm:$0xf]
        %v1996 = vld [vmem:[%s410 + $0x18] sm:$0xf]
        %v1997 = vld [vmem:[%s410 + $0x1c] sm:$0xf]
        %v1998 = vld [vmem:[%s410 + $0x20] sm:$0xf]
        %v1999 = vld [vmem:[%s410 + $0x24] sm:$0xf]
        %v2000 = vld [vmem:[%s410 + $0x28] sm:$0xf]
        %v2001 = vld [vmem:[%s410 + $0x2c] sm:$0xf]
        %v2002 = vld [vmem:[%s410 + $0x30] sm:$0xf]
        %v2003 = vld [vmem:[%s410 + $0x34] sm:$0xf]
        %v2004 = vld [vmem:[%s410 + $0x38] sm:$0xf]
        %v2005 = vld [vmem:[%s410 + $0x3c] sm:$0xf]
        %v2006 = vld [vmem:[%s410 + $0x40] sm:$0xf]
        %v2007 = vld [vmem:[%s410 + $0x44] sm:$0xf]
        %v2008 = vld [vmem:[%s410 + $0x48] sm:$0xf]
        %v2009 = vld [vmem:[%s410 + $0x4c] sm:$0xf]
        %v2010 = vld [vmem:[%s410 + $0x50] sm:$0xf]
        %v2011 = vld [vmem:[%s410 + $0x54] sm:$0xf]
        %v2012 = vld [vmem:[%s410 + $0x58] sm:$0xf]
        %v2013 = vld [vmem:[%s410 + $0x5c] sm:$0xf]
        %v2014 = vld [vmem:[%s410 + $0x60] sm:$0xf]
        %v2015 = vld [vmem:[%s410 + $0x64] sm:$0xf]
        %v2016 = vld [vmem:[%s410 + $0x68] sm:$0xf]
        %v2017 = vld [vmem:[%s410 + $0x6c] sm:$0xf]
        %v2018 = vld [vmem:[%s410 + $0x70] sm:$0xf]
        %v2019 = vld [vmem:[%s410 + $0x74] sm:$0xf]
        %v2020 = vld [vmem:[%s410 + $0x78] sm:$0xf]
        %v2021 = vld [vmem:[%s410 + $0x7c] sm:$0xf]
        %v2022 = vld [vmem:[%s410 + $0x80] sm:$0xf]
        %v2023 = vld [vmem:[%s410 + $0x84] sm:$0xf]
        %v2024 = vld [vmem:[%s410 + $0x88] sm:$0xf]
        %v2025 = vld [vmem:[%s410 + $0x8c] sm:$0xf]
        %v2026 = vld [vmem:[%s410 + $0x90] sm:$0xf]
        %v2027 = vld [vmem:[%s410 + $0x94] sm:$0xf]
        %v2028 = vld [vmem:[%s410 + $0x98] sm:$0xf]
        %v2029 = vld [vmem:[%s410 + $0x9c] sm:$0xf]
        %v2030 = vld [vmem:[%s410 + $0xa0] sm:$0xf]
        %v2031 = vld [vmem:[%s410 + $0xa4] sm:$0xf]
        %v2032 = vld [vmem:[%s410 + $0xa8] sm:$0xf]
        %v2033 = vld [vmem:[%s410 + $0xac] sm:$0xf]
        %v2034 = vld [vmem:[%s410 + $0xb0] sm:$0xf]
        %v2035 = vld [vmem:[%s410 + $0xb4] sm:$0xf]
        %v2036 = vld [vmem:[%s410 + $0xb8] sm:$0xf]
        %v2037 = vld [vmem:[%s410 + $0xbc] sm:$0xf]
        %v2038 = vld [vmem:[%s410 + $0xc0] sm:$0xf]
        %v2039 = vld [vmem:[%s410 + $0xc4] sm:$0xf]
        %v2040 = vld [vmem:[%s410 + $0xc8] sm:$0xf]
        %v2041 = vld [vmem:[%s410 + $0xcc] sm:$0xf]
        %v2042 = vld [vmem:[%s410 + $0xd0] sm:$0xf]
        %v2043 = vld [vmem:[%s410 + $0xd4] sm:$0xf]
        %v2044 = vld [vmem:[%s410 + $0xd8] sm:$0xf]
        %v2045 = vld [vmem:[%s410 + $0xdc] sm:$0xf]
        %v2046 = vld [vmem:[%s410 + $0xe0] sm:$0xf]
        %v2047 = vld [vmem:[%s410 + $0xe4] sm:$0xf]
        %v2048 = vld [vmem:[%s410 + $0xe8] sm:$0xf]
        %v2049 = vld [vmem:[%s410 + $0xec] sm:$0xf]
        %v2050 = vld [vmem:[%s410 + $0xf0] sm:$0xf]
        %v2051 = vld [vmem:[%s410 + $0xf4] sm:$0xf]
        %v2052 = vld [vmem:[%s410 + $0xf8] sm:$0xf]
        %v2053 = vld [vmem:[%s410 + $0xfc] sm:$0xf]
        %v2118 = vunpack.c.l.b16 %v1990
        %v2119 = vunpack.c.l.b16 %v1991
        %v2120 = vunpack.c.l.b16 %v1992
        %v2121 = vunpack.c.l.b16 %v1993
        %v2122 = vunpack.c.l.b16 %v1994
        %v2123 = vunpack.c.l.b16 %v1995
        %v2124 = vunpack.c.l.b16 %v1996
        %v2125 = vunpack.c.l.b16 %v1997
        %v2126 = vunpack.c.l.b16 %v1998
        %v2127 = vunpack.c.l.b16 %v1999
        %v2128 = vunpack.c.l.b16 %v2000
        %v2129 = vunpack.c.l.b16 %v2001
        %v2130 = vunpack.c.l.b16 %v2002
        %v2131 = vunpack.c.l.b16 %v2003
        %v2132 = vunpack.c.l.b16 %v2004
        %v2133 = vunpack.c.l.b16 %v2005
        %v2134 = vunpack.c.l.b16 %v2006
        %v2135 = vunpack.c.l.b16 %v2007
        %v2136 = vunpack.c.l.b16 %v2008
        %v2137 = vunpack.c.l.b16 %v2009
        %v2138 = vunpack.c.l.b16 %v2010
        %v2139 = vunpack.c.l.b16 %v2011
        %v2140 = vunpack.c.l.b16 %v2012
        %v2141 = vunpack.c.l.b16 %v2013
        %v2142 = vunpack.c.l.b16 %v2014
        %v2143 = vunpack.c.l.b16 %v2015
        %v2144 = vunpack.c.l.b16 %v2016
        %v2145 = vunpack.c.l.b16 %v2017
        %v2146 = vunpack.c.l.b16 %v2018
        %v2147 = vunpack.c.l.b16 %v2019
        %v2148 = vunpack.c.l.b16 %v2020
        %v2149 = vunpack.c.l.b16 %v2021
        %v2150 = vunpack.c.l.b16 %v2022
        %v2151 = vunpack.c.l.b16 %v2023
        %v2152 = vunpack.c.l.b16 %v2024
        %v2153 = vunpack.c.l.b16 %v2025
        %v2154 = vunpack.c.l.b16 %v2026
        %v2155 = vunpack.c.l.b16 %v2027
        %v2156 = vunpack.c.l.b16 %v2028
        %v2157 = vunpack.c.l.b16 %v2029
        %v2158 = vunpack.c.l.b16 %v2030
        %v2159 = vunpack.c.l.b16 %v2031
        %v2160 = vunpack.c.l.b16 %v2032
        %v2161 = vunpack.c.l.b16 %v2033
        %v2162 = vunpack.c.l.b16 %v2034
        %v2163 = vunpack.c.l.b16 %v2035
        %v2164 = vunpack.c.l.b16 %v2036
        %v2165 = vunpack.c.l.b16 %v2037
        %v2166 = vunpack.c.l.b16 %v2038
        %v2167 = vunpack.c.l.b16 %v2039
        %v2168 = vunpack.c.l.b16 %v2040
        %v2169 = vunpack.c.l.b16 %v2041
        %v2170 = vunpack.c.l.b16 %v2042
        %v2171 = vunpack.c.l.b16 %v2043
        %v2172 = vunpack.c.l.b16 %v2044
        %v2173 = vunpack.c.l.b16 %v2045
        %v2174 = vunpack.c.l.b16 %v2046
        %v2175 = vunpack.c.l.b16 %v2047
        %v2176 = vunpack.c.l.b16 %v2048
        %v2177 = vunpack.c.l.b16 %v2049
        %v2178 = vunpack.c.l.b16 %v2050
        %v2179 = vunpack.c.l.b16 %v2051
        %v2180 = vunpack.c.l.b16 %v2052
        %v2181 = vunpack.c.l.b16 %v2053
        %v2182 = vpack.c.b16 %v2119, %v2118
        %v2183 = vpack.c.b16 %v2121, %v2120
        %v2184 = vpack.c.b16 %v2123, %v2122
        %v2185 = vpack.c.b16 %v2125, %v2124
        %v2186 = vpack.c.b16 %v2127, %v2126
        %v2187 = vpack.c.b16 %v2129, %v2128
        %v2188 = vpack.c.b16 %v2131, %v2130
        %v2189 = vpack.c.b16 %v2133, %v2132
        %v2190 = vpack.c.b16 %v2135, %v2134
        %v2191 = vpack.c.b16 %v2137, %v2136
        %v2192 = vpack.c.b16 %v2139, %v2138
        %v2193 = vpack.c.b16 %v2141, %v2140
        %v2194 = vpack.c.b16 %v2143, %v2142
        %v2195 = vpack.c.b16 %v2145, %v2144
        %v2196 = vpack.c.b16 %v2147, %v2146
        %v2197 = vpack.c.b16 %v2149, %v2148
        %v2198 = vpack.c.b16 %v2151, %v2150
        %v2199 = vpack.c.b16 %v2153, %v2152
        %v2200 = vpack.c.b16 %v2155, %v2154
        %v2201 = vpack.c.b16 %v2157, %v2156
        %v2202 = vpack.c.b16 %v2159, %v2158
        %v2203 = vpack.c.b16 %v2161, %v2160
        %v2204 = vpack.c.b16 %v2163, %v2162
        %v2205 = vpack.c.b16 %v2165, %v2164
        %v2206 = vpack.c.b16 %v2167, %v2166
        %v2207 = vpack.c.b16 %v2169, %v2168
        %v2208 = vpack.c.b16 %v2171, %v2170
        %v2209 = vpack.c.b16 %v2173, %v2172
        %v2210 = vpack.c.b16 %v2175, %v2174
        %v2211 = vpack.c.b16 %v2177, %v2176
        %v2212 = vpack.c.b16 %v2179, %v2178
        %v2213 = vpack.c.b16 %v2181, %v2180
        %2246 = vmatprep.subr.bf16.mxu0 0
        %2247 = vmatpush1.bf16.msra.mxu0 %v2189
        %2248 = vmatprep.subr.bf16.mxu0 0
        %2249 = vmatpush1.bf16.msra.mxu0 %v2188
        %2250 = vmatprep.subr.bf16.mxu0 0
        %2251 = vmatpush1.bf16.msra.mxu0 %v2187
        %2252 = vmatprep.subr.bf16.mxu0 0
        %2253 = vmatpush1.bf16.msra.mxu0 %v2186
        %2254 = vmatprep.subr.bf16.mxu0 0
        %2255 = vmatpush1.bf16.msra.mxu0 %v2185
        %2256 = vmatprep.subr.bf16.mxu0 0
        %2257 = vmatpush1.bf16.msra.mxu0 %v2184
        %2258 = vmatprep.subr.bf16.mxu0 0
        %2259 = vmatpush1.bf16.msra.mxu0 %v2183
        %2260 = vmatprep.subr.bf16.mxu0 0
        %2261 = vmatpush1.bf16.msra.mxu0 %v2182
        %2262 = vmatprep.subr.bf16.mxu0 0
        %2263 = vmatpush2.bf16.msra.mxu0 %v2197
        %2264 = vmatprep.subr.bf16.mxu0 0
        %2265 = vmatpush2.bf16.msra.mxu0 %v2196
        %2266 = vmatprep.subr.bf16.mxu0 0
        %2267 = vmatpush2.bf16.msra.mxu0 %v2195
        %2268 = vmatprep.subr.bf16.mxu0 0
        %2269 = vmatpush2.bf16.msra.mxu0 %v2194
        %2270 = vmatprep.subr.bf16.mxu0 0
        %2271 = vmatpush2.bf16.msra.mxu0 %v2193
        %2272 = vmatprep.subr.bf16.mxu0 0
        %2273 = vmatpush2.bf16.msra.mxu0 %v2192
        %2274 = vmatprep.subr.bf16.mxu0 0
        %2275 = vmatpush2.bf16.msra.mxu0 %v2191
        %2276 = vmatprep.subr.bf16.mxu0 0
        %2277 = vmatpush2.bf16.msra.mxu0 %v2190
        %2278 = vmatprep.mubr.bf16.mxu0 %v1987
        %2279 = vmatmul.mubr.bf16.gmra.mxu0 %v1986
        %v2280 = vpop.f32.mrf.mxu0
        %v2281 = vadd.f32 0.0, %v2280
        %v2282 = vpop.f32.mrf.mxu0
        %v2283 = vpop.f32.mrf.mxu0
        %v2284 = vpop.f32.mrf.mxu0
        %2285 = vdwg.mxu0
        %2286 = vmatprep.subr.bf16.mxu0 0
        %2287 = vmatpush1.bf16.msra.mxu0 %v2205
        %2288 = vmatprep.subr.bf16.mxu0 0
        %2289 = vmatpush1.bf16.msra.mxu0 %v2204
        %2290 = vmatprep.subr.bf16.mxu0 0
        %2291 = vmatpush1.bf16.msra.mxu0 %v2203
        %2292 = vmatprep.subr.bf16.mxu0 0
        %2293 = vmatpush1.bf16.msra.mxu0 %v2202
        %2294 = vmatprep.subr.bf16.mxu0 0
        %2295 = vmatpush1.bf16.msra.mxu0 %v2201
        %2296 = vmatprep.subr.bf16.mxu0 0
        %2297 = vmatpush1.bf16.msra.mxu0 %v2200
        %2298 = vmatprep.subr.bf16.mxu0 0
        %2299 = vmatpush1.bf16.msra.mxu0 %v2199
        %2300 = vmatprep.subr.bf16.mxu0 0
        %2301 = vmatpush1.bf16.msra.mxu0 %v2198
        %2302 = vmatprep.subr.bf16.mxu0 0
        %2303 = vmatpush2.bf16.msra.mxu0 %v2213
        %2304 = vmatprep.subr.bf16.mxu0 0
        %2305 = vmatpush2.bf16.msra.mxu0 %v2212
        %2306 = vmatprep.subr.bf16.mxu0 0
        %2307 = vmatpush2.bf16.msra.mxu0 %v2211
        %2308 = vmatprep.subr.bf16.mxu0 0
        %2309 = vmatpush2.bf16.msra.mxu0 %v2210
        %2310 = vmatprep.subr.bf16.mxu0 0
        %2311 = vmatpush2.bf16.msra.mxu0 %v2209
        %2312 = vmatprep.subr.bf16.mxu0 0
        %2313 = vmatpush2.bf16.msra.mxu0 %v2208
        %2314 = vmatprep.subr.bf16.mxu0 0
        %2315 = vmatpush2.bf16.msra.mxu0 %v2207
        %2316 = vmatprep.subr.bf16.mxu0 0
        %2317 = vmatpush2.bf16.msra.mxu0 %v2206
        %2318 = vmatprep.mubr.bf16.mxu0 %v1989
        %2319 = vmatmul.mubr.bf16.gmra.mxu0 %v1988
        %v2320 = vpop.f32.mrf.mxu0
        %v2321 = vadd.f32 %v2281, %v2320
        %v2322 = vpop.f32.mrf.mxu0
        %v2323 = vpop.f32.mrf.mxu0
        %v2324 = vpop.f32.mrf.mxu0
        %2325 = vdwg.mxu0
        %v2326 = vadd.f32 %v1985, %v2321
        %vm2327 = vcmask 326656
        %2328 = vst.msk [vmem:[#allocation2] sm:$0xff] %vm2327, %v2326
        %p2329 = scmp.eq.s32.totalorder %s30, 7
        // Predicated region
        $region73: #{tpu_custom_call.1} parent=47 // pred_check
          %p2330 = pneg %p2329
        $region74: #{tpu_custom_call.1} parent=47 // pred_check_branch
          %2332 = sbr.rel (%p2330) target = $region76
        $region75: #{tpu_custom_call.1} parent=47 // pred_region
          %v2333 = vld [vmem:[#allocation2] sm:$0xff]
          %v2334 = vld [vmem:[#allocation9] sm:$0x1]
          %v2336 = vlaneseq
          %v2337 = vshrl.u32 %v2336, 7
          %v2338 = vsub.s32 0, %v2337
          %v2339 = vrot.slane %v2334, %v2338
          %v2341 = vadd.f32 %v2333, %v2339
          %v2342 = vmax.f32 %v2341, 0.0
          %v2343 = vld [vmem:[#allocation11] sm:$0x1]
          %v2345 = vlaneseq
          %v2346 = vshrl.u32 %v2345, 7
          %v2347 = vsub.s32 0, %v2346
          %v2348 = vrot.slane %v2343, %v2347
          %v2350 = vmul.f32 %v2342, %v2348
          %v2351 = vsel %vm2327, %v2350, 0.0
          %2352 = vadd.xlane.f32.xlu0 %v2351
          %v2353 = vpop.xlane.xlu0 %2352
          %v2354 = vld [vmem:[#allocation3] sm:$0x1]
          %v2356 = vlaneseq
          %v2357 = vshrl.u32 %v2356, 7
          %v2358 = vsub.s32 0, %v2357
          %v2359 = vrot.slane %v2354, %v2358
          %v2361 = vadd.f32 %v2353, %v2359
          %v2362 = vsub.f32 0.0, %v2361
          %v2363 = vmul.f32 %v2362, 1.442695
          %v2364 = vpow.pop %v2363
          %v2365 = vadd.f32 %v2364, 1.0
          %v2366 = vrcp.pop %v2365
          %v2367 = vmul.f32 1.0, %v2366
          %vm2368 = vcmask 7168
          %2369 = vst.msk [vmem:[%s415] sm:$0xff] %vm2368, %v2367
        $region76: #{tpu_custom_call.1} parent=47 // pred_fallthru
          _
        %p2370 = scmp.lt.s32.totalorder %s29, 0
        %s2371 = scalar_select %p2370, %s29, 0
        %s2372 = smul.addr %s2371, 8
        %s2373 = scalar_lea.vmem %s7, %s2372
        // Predicated region
        $region77: #{tpu_custom_call.1} parent=47 // pred_check
          %p2374 = pneg %p222
        $region78: #{tpu_custom_call.1} parent=47 // pred_check_branch
          %2376 = sbr.rel (%p2374) target = $region80
        $region79: #{tpu_custom_call.1} parent=47 // pred_region
          _
        $region80: #{tpu_custom_call.1} parent=47 // pred_fallthru
          _
        // Predicated region
        $region81: #{tpu_custom_call.1} parent=47 // pred_check
          %p2377 = pneg %p222
        $region82: #{tpu_custom_call.1} parent=47 // pred_check_branch
          %2379 = sbr.rel (%p2377) target = $region84
        $region83: #{tpu_custom_call.1} parent=47 // pred_region
          %p2380 = scmp.lt.s32.totalorder %s29, 0
          %s2381 = scalar_select %p2380, %s29, 0
          %s2382 = smul.addr %s2381, 8
          %s2383 = scalar_lea.vmem %s7, %s2382
        $region84: #{tpu_custom_call.1} parent=47 // pred_fallthru
          _
      $region48: #{tpu_custom_call.1} parent=5 // pred_fallthru
        _
      %p2384 = scmp.le.s32.totalorder 2, %s20
      // Predicated region
      $region85: #{tpu_custom_call.1} parent=5 // pred_check
        %p2385 = pneg %p2384
      $region86: #{tpu_custom_call.1} parent=5 // pred_check_branch
        %2387 = sbr.rel (%p2385) target = $region88
      $region87: #{tpu_custom_call.1} parent=5 // pred_region
        %s2388 = ssub.s32 %s20, 2
      $region88: #{tpu_custom_call.1} parent=5 // pred_fallthru
        _
    $region6: #{tpu_custom_call.1} parent=1 // loop_footer
      %s24 = sadd.s32 1, %s20
    $region7: #{tpu_custom_call.1} parent=1 // loop_footer_branch
      %19 = sbr.rel target = $region3
    $region8: #{tpu_custom_call.1} parent=1 // loop_exit
      _
    %2389 = vsyncpa [#allocation5], 1
    %s2390 = scalar_lea.sflag [#allocation5], 1
    %2391 = vsyncpa %s2390, 1
    %2392 = vsyncpa [#allocation7], 1
    %s2393 = scalar_lea.sflag [#allocation7], 1
    %2394 = vsyncpa %s2393, 1
    %2395 = vsyncpa [#allocation10], 1

</llo_original>
